<compile_context>
chip_gen: v5e
topology: v5e:2x2
jax: 0.10.0
libtpu: 0.0.40
codegen_flags: <defaults>
</compile_context>

<pallas_src>
import functools

import jax
import jax.numpy as jnp
import numpy as np
from jax import lax
from jax.experimental import pallas as pl
from jax.experimental.pallas import tpu as pltpu

# ---------------- model / example dimensions ----------------
B = 2            # batch
IMG = 32         # input image H=W
PATCH = 4        # synthetic backbone patch size
H_G = W_G = IMG // PATCH          # feature-grid spatial size (8 x 8)
HW = H_G * W_G                    # 64
L = 2            # number of backbone layers used (cfg.MODEL.BACKBONE.LAYERS)
C_CONV = 32      # cfg.MODEL.CONV_HEAD.WIDTH
D_PREV = 16      # cfg.MODEL.BACKBONE_SMALL.WIDTH
D_MERGE = 16     # cfg.MODEL.BACKBONE_SMALL.MERGE_WIDTH
D_PT = 8         # cfg.MODEL.COND.PASSTHROUGH_DIM
D_REST = D_PREV + D_MERGE + 2 * D_PT          # 48
D_MODEL = C_CONV + D_REST                     # 80
H_MLP = 32       # coords-MLP hidden width
BHV_DIM = 6      # behavior vector dim
COORD_DIM = 3    # cfg.POSITION_ENCODING.IN_DIM
N_VOX = 256      # voxels for this subject
MU_SIGMA = 0.1   # cfg.MODEL.RETINA_MAPPER.CONSTANT_SIGMA

# packed per-voxel slab layout (rows of the (PACK, N_VOX) kernel input)
ROW_WCONV = 0                    # rows [0, 32) : (w_vox[:, :C_CONV] / D_MODEL).T
ROW_MU = C_CONV                  # rows [32, 34): retina-mapper mu (x, y)
ROW_WL = C_CONV + 2              # rows [34, 36): layer-selector softmax weights
ROW_EXTRA = C_CONV + 2 + L       # rows [36, 38): per-(voxel,batch) offset
PACK = C_CONV + 2 + L + B        # 38


# ---------------- Pallas kernel ----------------
def _voxel_kernel(vox_ref, feat_ref, out_ref):
    """One voxel tile: build the layer-weighted bilinear matrix with separable
    tents (cheap VALU on (8, TN) arrays + sublane concat), contract it against
    the fused (B*C, L*HW) feature slab in ONE f32 MXU matmul (layer mixing is
    folded into the K dimension), finish the per-voxel readout on VPU/XLU and
    store the (B, TN) output rows lane-dense."""
    f32 = jnp.float32
    vox = vox_ref[...]                                   # (PACK, TN) f32
    tn = vox.shape[1]

    # w_conv rows already carry the 1/D_MODEL mean factor (folded in wrapper).
    w_conv = vox[ROW_WCONV:ROW_WCONV + C_CONV, :]        # (C, TN)
    mu_x = vox[ROW_MU:ROW_MU + 1, :]                     # (1, TN)
    mu_y = vox[ROW_MU + 1:ROW_MU + 2, :]                 # (1, TN)
    wl = vox[ROW_WL:ROW_WL + L, :]                       # (L, TN)
    extra = vox[ROW_EXTRA:ROW_EXTRA + B, :]              # (B, TN)

    # ---- separable bilinear tent weights (align_corners=False, zero pad) ----
    # wx[j, v] = relu(1 - |j - px[v]|); out-of-range corners never appear in
    # the [0, W_G) iota range, so zero-padding semantics are preserved exactly.
    px = (mu_x + 1.0) * (W_G * 0.5) - 0.5                # (1, TN)
    py = (mu_y + 1.0) * (H_G * 0.5) - 0.5                # (1, TN)
    jx = lax.broadcasted_iota(jnp.int32, (W_G, tn), 0).astype(f32)
    jy = lax.broadcasted_iota(jnp.int32, (H_G, tn), 0).astype(f32)
    wx = jnp.maximum(1.0 - jnp.abs(jx - px), 0.0)        # (W_G, TN)
    wy = jnp.maximum(1.0 - jnp.abs(jy - py), 0.0)        # (H_G, TN)

    # ---- layer-weighted interp matrix, stacked on K: (L*HW, TN) ----
    # row l*HW + y*W + x  =  wl[l] * wy[y] * wx[x]   (built as 8-sublane tiles,
    # expanded with a plain sublane concatenate — no reshape relayout).
    rows = []
    for layer in range(L):
        wyl = wy * wl[layer:layer + 1, :]                # (H_G, TN)
        for yy in range(H_G):
            rows.append(wx * wyl[yy:yy + 1, :])          # (W_G, TN)
    rhs = jnp.concatenate(rows, axis=0)                  # (L*HW, TN) = (128, TN)

    # ---- fused, layer-mixed grid-sample: one (B*C, L*HW) x (L*HW, TN) dot ----
    samp = jnp.dot(feat_ref[...], rhs,
                   preferred_element_type=f32,
                   precision=lax.Precision.HIGHEST)      # (B*C, TN) f32

    # ---- per-voxel linear readout: sum_c samp[b,c,:] * w_conv[c,:] + extra ----
    for b in range(B):
        s = samp[b * C_CONV:(b + 1) * C_CONV, :]         # (C, TN)
        out_ref[b:b + 1, :] = (
            jnp.sum(s * w_conv, axis=0, keepdims=True)
            + extra[b:b + 1, :]).astype(out_ref.dtype)   # lane-dense row store


def voxelwise_readout(coords, params, feat_lbpc, cls_blc, rest_db,
                      *, voxel_tile=None):
    """Voxel-wise readout. The tiny coords-MLPs (layer selector / retina mapper)
    and all voxel-independent contributions (cls tokens, passthrough / prev-frame
    features, bias) are hoisted into trivial XLA ops; the Pallas kernel does the
    bilinear grid-sample + layer mixing + per-voxel linear readout.
    Returns (B, N_VOX)."""
    f32 = jnp.float32
    # exact erf GELU — matches PyTorch nn.GELU default
    gelu = functools.partial(jax.nn.gelu, approximate=False)
    coords = coords.astype(f32)

    # layer selector: MLP(coords) -> softmax over layers          (N_VOX, L)
    w_layer = jax.nn.softmax(
        gelu(coords @ params["ls_w1"] + params["ls_b1"]) @ params["ls_w2"]
        + params["ls_b2"], axis=-1)
    # retina mapper: MLP(coords) -> tanh * (1 - mu_sigma)         (N_VOX, 2)
    mu = jnp.tanh(
        gelu(coords @ params["rm_w1"] + params["rm_b1"]) @ params["rm_w2"]
        + params["rm_b2"]) * (1.0 - MU_SIGMA)

    w_vox = params["w_vox"].astype(f32)
    w_conv = w_vox[:, :C_CONV]                                   # (N_VOX, C)
    w_rest = w_vox[:, C_CONV:]                                   # (N_VOX, D_REST)

    # voxel-independent readout contributions, computed once in XLA:
    rest_contrib = w_rest @ rest_db                              # (N_VOX, B)
    cls_dot = jnp.einsum('nc,blc->nbl', w_conv, cls_blc)         # (N_VOX, B, L)
    cls_contrib = jnp.einsum('nl,nbl->nb', w_layer, cls_dot)     # (N_VOX, B)
    extra = ((rest_contrib + cls_contrib) * (1.0 / D_MODEL)
             + params["b_vox"][:, None])                         # (N_VOX, B)

    # one lane-dense per-voxel slab: rows = [w_conv/D_MODEL | mu | w_layer | extra]
    vox_pack = jnp.concatenate(
        [w_conv * (1.0 / D_MODEL), mu, w_layer, extra], axis=1).astype(f32).T
    # fused features: (B, C, L, HW) -> (B*C, L*HW) = (64, 128), f32, lane-dense
    feat2d = jnp.transpose(feat_lbpc, (1, 3, 0, 2)).reshape(
        B * C_CONV, L * HW).astype(f32)

    # Voxel tile: explicit argument (no device sniffing).  ~0.1 MiB total VMEM
    # footprint, so the tile is sized by per-step overhead only; large lane
    # tiles (512) amortize the ~0.35 us/step cost for big N_VOX.  With
    # N_VOX=256 this is a single grid step on every TPU generation.
    tn = voxel_tile if voxel_tile is not None else min(N_VOX, 512)
    assert N_VOX % tn == 0, (N_VOX, tn)
    grid = (N_VOX // tn,)
    # TODO(synk): if invoked once per frame in production, add a frames axis to
    # the grid so one pallas_call amortizes dispatch overhead across frames.
    return pl.pallas_call(
        _voxel_kernel,
        out_shape=jax.ShapeDtypeStruct((B, N_VOX), jnp.float32),
        grid_spec=pltpu.PrefetchScalarGridSpec(
            num_scalar_prefetch=0,
            grid=grid,
            in_specs=[
                pl.BlockSpec((PACK, tn), lambda i: (0, i)),          # voxel slab
                pl.BlockSpec((B * C_CONV, L * HW), lambda i: (0, 0)),  # fused feats
            ],
            out_specs=pl.BlockSpec((B, tn), lambda i: (0, i)),
        ),
        compiler_params=pltpu.CompilerParams(
            dimension_semantics=("arbitrary",)),
    )(vox_pack, feat2d)


# ---------------- JAX glue: synthetic backbone + wrapper ----------------
def _patchify(x):
    # x: (B, 3, IMG, IMG) NCHW  ->  (B, HW, 3*PATCH*PATCH)
    b, c, h, w = x.shape
    x = x.reshape(b, c, H_G, PATCH, W_G, PATCH)
    x = jnp.transpose(x, (0, 2, 4, 1, 3, 5))
    return x.reshape(b, HW, c * PATCH * PATCH)


def forward(params, x, bhv, coords):
    """Eval-mode forward of DevMemVoxelWiseEncodingModel (main config path:
    USE_RETINA_MAPPER / USE_LAYER_SELECTOR / USE_BHV_PASSTHROUGH = True,
    USE_PREV_FRAME / BEHV_ONLY = False).  Returns out_y of shape (B, N_vox)."""
    # TODO(synk): AdaLNLoRADiNOv2ViT backbone + conv_blocks + cls_blocks replaced
    # by deterministic per-layer linear projections of image patches.
    patches = _patchify(x.astype(jnp.float32))                   # (B, HW, 48)
    feat_lbpc = jnp.stack(
        [patches @ params["feat_proj"][l] for l in range(L)], axis=0)    # (L,B,HW,C)
    cls_blc = jnp.stack(
        [patches.mean(axis=1) @ params["cls_proj"][l] for l in range(L)],
        axis=1)                                                  # (B, L, C)

    # behavior passthrough (behav_pt); prev-frame branch disabled -> zeros
    c_pt0 = bhv.astype(jnp.float32) @ params["pt_w"] + params["pt_b"]    # (B, D_PT)
    x_cls_prev = jnp.zeros((B, D_PREV), jnp.float32)
    x_p = jnp.zeros((B, D_MERGE), jnp.float32)
    c_pt1 = jnp.zeros((B, D_PT), jnp.float32)
    rest = jnp.concatenate([x_cls_prev, x_p, c_pt0, c_pt1], axis=-1)     # (B, D_REST)
    rest_db = rest.T                                             # (D_REST, B)

    out = voxelwise_readout(coords, params, feat_lbpc, cls_blc, rest_db)
    return out, feat_lbpc, cls_blc, rest_db


# ---------------- pure-JAX reference of the voxel readout ----------------
def _ref_grid_sample(feat_nchw, mu):
    # feat_nchw: (B, C, H, W), mu: (Nv, 2) with (x, y) in [-1, 1]
    _, _, hh, ww = feat_nchw.shape
    px = (mu[:, 0] + 1.0) * (ww * 0.5) - 0.5
    py = (mu[:, 1] + 1.0) * (hh * 0.5) - 0.5
    x0 = jnp.floor(px).astype(jnp.int32); x1 = x0 + 1
    y0 = jnp.floor(py).astype(jnp.int32); y1 = y0 + 1
    wx1 = px - x0.astype(jnp.float32); wx0 = 1.0 - wx1
    wy1 = py - y0.astype(jnp.float32); wy0 = 1.0 - wy1

    def gather(yy, xx):
        valid = ((xx >= 0) & (xx < ww) & (yy >= 0) & (yy < hh)).astype(jnp.float32)
        xc = jnp.clip(xx, 0, ww - 1)
        yc = jnp.clip(yy, 0, hh - 1)
        return feat_nchw[:, :, yc, xc] * valid[None, None, :]

    return (gather(y0, x0) * (wy0 * wx0)[None, None, :]
            + gather(y0, x1) * (wy0 * wx1)[None, None, :]
            + gather(y1, x0) * (wy1 * wx0)[None, None, :]
            + gather(y1, x1) * (wy1 * wx1)[None, None, :])       # (B, C, Nv)


def reference_readout(params, feat_lbpc, cls_blc, rest_db, coords):
    gelu = functools.partial(jax.nn.gelu, approximate=False)
    w_layer = jax.nn.softmax(
        gelu(coords @ params["ls_w1"] + params["ls_b1"]) @ params["ls_w2"]
        + params["ls_b2"], axis=-1)                              # (Nv, L)
    mu = jnp.tanh(
        gelu(coords @ params["rm_w1"] + params["rm_b1"]) @ params["rm_w2"]
        + params["rm_b2"]) * (1.0 - MU_SIGMA)                    # (Nv, 2)

    x_ret = 0.0
    for l in range(L):
        feat_nchw = jnp.transpose(feat_lbpc[l], (0, 2, 1)).reshape(B, C_CONV, H_G, W_G)
        s = jnp.transpose(_ref_grid_sample(feat_nchw, mu), (0, 2, 1))   # (B, Nv, C)
        x_ret = x_ret + s * w_layer[None, :, l:l + 1]
    x_cls_sel = jnp.einsum('blc,nl->bnc', cls_blc, w_layer)
    x_y = x_ret + x_cls_sel                                      # (B, Nv, C)

    w_vox = params["w_vox"]
    main = jnp.einsum('bnc,nc->bn', x_y, w_vox[:, :C_CONV])
    rest_contrib = jnp.einsum('db,nd->bn', rest_db, w_vox[:, C_CONV:])
    # NOTE: 1/D_MODEL mean includes the zeroed prev-frame dims, matching the
    # USE_PREV_FRAME=False path of the PyTorch module.
    return (main + rest_contrib) / D_MODEL + params["b_vox"][None, :]


# ---------------- parameter init ----------------
def make_params(key):
    ks = jax.random.split(key, 16)
    n = lambda k, s, scale=0.1: scale * jax.random.normal(k, s, jnp.float32)
    patch_dim = 3 * PATCH * PATCH
    return {
        "feat_proj": n(ks[0], (L, patch_dim, C_CONV)),
        "cls_proj": n(ks[1], (L, patch_dim, C_CONV)),
        "ls_w1": n(ks[2], (COORD_DIM, H_MLP), 0.5),
        "ls_b1": n(ks[3], (1, H_MLP), 0.1),
        "ls_w2": n(ks[4], (H_MLP, L), 0.5),
        "ls_b2": n(ks[5], (1, L), 0.1),
        "rm_w1": n(ks[6], (COORD_DIM, H_MLP), 0.5),
        "rm_b1": n(ks[7], (1, H_MLP), 0.1),
        "rm_w2": n(ks[8], (H_MLP, 2), 0.5),
        "rm_b2": n(ks[9], (1, 2), 0.1),
        "pt_w": n(ks[10], (BHV_DIM, D_PT)),
        "pt_b": n(ks[11], (D_PT,)),
        "w_vox": n(ks[12], (N_VOX, D_MODEL)),     # VoxelNonShareLinearWeight
        "b_vox": n(ks[13], (N_VOX,)),
    }


if __name__ == "__main__":
    key = jax.random.PRNGKey(0)
    kp, kx, kb, kc = jax.random.split(key, 4)
    params = make_params(kp)

    x = jax.random.normal(kx, (B, 3, IMG, IMG), jnp.float32)     # NCHW image
    bhv = jax.random.normal(kb, (B, BHV_DIM), jnp.float32)
    coords = jax.random.normal(kc, (N_VOX, COORD_DIM), jnp.float32)

    fwd = jax.jit(forward)
    out, feat_lbpc, cls_blc, rest_db = fwd(params, x, bhv, coords)
    out = jax.block_until_ready(out)

    ref = reference_readout(params, feat_lbpc, cls_blc, rest_db, coords)
    ref = jax.block_until_ready(ref)

    err = float(jnp.max(jnp.abs(out - ref)))
    assert out.shape == (B, N_VOX), out.shape
    assert np.allclose(np.asarray(out), np.asarray(ref), atol=5e-3, rtol=5e-2), \
        f"max abs err {err}"
    print("KERNEL_OK")
</pallas_src>

<mosaic_0001>
module attributes {stable_mosaic.version = 11 : i64} {
  func.func @_voxel_kernel(%arg0: i32, %arg1: memref<38x256xf32, #tpu.memory_space<vmem>>, %arg2: memref<64x128xf32, #tpu.memory_space<vmem>>, %arg3: memref<2x256xf32, #tpu.memory_space<vmem>>) attributes {dimension_semantics = [#tpu.dimension_semantics<arbitrary>], iteration_bounds = array<i64: 1>, scalar_prefetch = 0 : i64, scratch_operands = 0 : i64, tpu.core_type = #tpu.core_type<tc>, window_params = [{transform_indices = @transform_0, window_bounds = array<i64: 38, 256>}, {pipeline_mode = #tpu.pipeline_mode<synchronous>, transform_indices = @transform_1, window_bounds = array<i64: 64, 128>}, {transform_indices = @transform_2, window_bounds = array<i64: 2, 256>}]} {
    %c0 = arith.constant 0 : index
    %c0_0 = arith.constant 0 : index
    %0 = vector.load %arg1[%c0, %c0_0] : memref<38x256xf32, #tpu.memory_space<vmem>>, vector<38x256xf32>
    %1 = vector.extract_strided_slice %0 {offsets = [0, 0], sizes = [32, 256], strides = [1, 1]} : vector<38x256xf32> to vector<32x256xf32>
    %2 = vector.extract_strided_slice %0 {offsets = [32, 0], sizes = [1, 256], strides = [1, 1]} : vector<38x256xf32> to vector<1x256xf32>
    %3 = vector.extract_strided_slice %0 {offsets = [33, 0], sizes = [1, 256], strides = [1, 1]} : vector<38x256xf32> to vector<1x256xf32>
    %4 = vector.extract_strided_slice %0 {offsets = [34, 0], sizes = [2, 256], strides = [1, 1]} : vector<38x256xf32> to vector<2x256xf32>
    %5 = vector.extract_strided_slice %0 {offsets = [36, 0], sizes = [2, 256], strides = [1, 1]} : vector<38x256xf32> to vector<2x256xf32>
    %cst = arith.constant 1.000000e+00 : f32
    %6 = vector.broadcast %cst : f32 to vector<1x256xf32>
    %7 = arith.addf %2, %6 : vector<1x256xf32>
    %cst_1 = arith.constant 4.000000e+00 : f32
    %8 = vector.broadcast %cst_1 : f32 to vector<1x256xf32>
    %9 = arith.mulf %7, %8 : vector<1x256xf32>
    %cst_2 = arith.constant 5.000000e-01 : f32
    %10 = vector.broadcast %cst_2 : f32 to vector<1x256xf32>
    %11 = arith.subf %9, %10 : vector<1x256xf32>
    %cst_3 = arith.constant 1.000000e+00 : f32
    %12 = vector.broadcast %cst_3 : f32 to vector<1x256xf32>
    %13 = arith.addf %3, %12 : vector<1x256xf32>
    %cst_4 = arith.constant 4.000000e+00 : f32
    %14 = vector.broadcast %cst_4 : f32 to vector<1x256xf32>
    %15 = arith.mulf %13, %14 : vector<1x256xf32>
    %cst_5 = arith.constant 5.000000e-01 : f32
    %16 = vector.broadcast %cst_5 : f32 to vector<1x256xf32>
    %17 = arith.subf %15, %16 : vector<1x256xf32>
    %18 = tpu.iota {dimensions = array<i32: 0>} : vector<8x256xi32>
    %19 = arith.sitofp %18 : vector<8x256xi32> to vector<8x256xf32>
    %20 = tpu.iota {dimensions = array<i32: 0>} : vector<8x256xi32>
    %21 = arith.sitofp %20 : vector<8x256xi32> to vector<8x256xf32>
    %22 = vector.broadcast %11 : vector<1x256xf32> to vector<8x256xf32>
    %23 = arith.subf %19, %22 : vector<8x256xf32>
    %24 = math.absf %23 : vector<8x256xf32>
    %cst_6 = arith.constant 1.000000e+00 : f32
    %25 = vector.broadcast %cst_6 : f32 to vector<8x256xf32>
    %26 = arith.subf %25, %24 : vector<8x256xf32>
    %cst_7 = arith.constant 0.000000e+00 : f32
    %27 = vector.broadcast %cst_7 : f32 to vector<8x256xf32>
    %28 = arith.maximumf %26, %27 : vector<8x256xf32>
    %29 = vector.broadcast %17 : vector<1x256xf32> to vector<8x256xf32>
    %30 = arith.subf %21, %29 : vector<8x256xf32>
    %31 = math.absf %30 : vector<8x256xf32>
    %cst_8 = arith.constant 1.000000e+00 : f32
    %32 = vector.broadcast %cst_8 : f32 to vector<8x256xf32>
    %33 = arith.subf %32, %31 : vector<8x256xf32>
    %cst_9 = arith.constant 0.000000e+00 : f32
    %34 = vector.broadcast %cst_9 : f32 to vector<8x256xf32>
    %35 = arith.maximumf %33, %34 : vector<8x256xf32>
    %36 = vector.extract_strided_slice %4 {offsets = [0, 0], sizes = [1, 256], strides = [1, 1]} : vector<2x256xf32> to vector<1x256xf32>
    %37 = vector.broadcast %36 : vector<1x256xf32> to vector<8x256xf32>
    %38 = arith.mulf %35, %37 : vector<8x256xf32>
    %39 = vector.extract_strided_slice %38 {offsets = [0, 0], sizes = [1, 256], strides = [1, 1]} : vector<8x256xf32> to vector<1x256xf32>
    %40 = vector.broadcast %39 : vector<1x256xf32> to vector<8x256xf32>
    %41 = arith.mulf %28, %40 : vector<8x256xf32>
    %42 = vector.extract_strided_slice %38 {offsets = [1, 0], sizes = [1, 256], strides = [1, 1]} : vector<8x256xf32> to vector<1x256xf32>
    %43 = vector.broadcast %42 : vector<1x256xf32> to vector<8x256xf32>
    %44 = arith.mulf %28, %43 : vector<8x256xf32>
    %45 = vector.extract_strided_slice %38 {offsets = [2, 0], sizes = [1, 256], strides = [1, 1]} : vector<8x256xf32> to vector<1x256xf32>
    %46 = vector.broadcast %45 : vector<1x256xf32> to vector<8x256xf32>
    %47 = arith.mulf %28, %46 : vector<8x256xf32>
    %48 = vector.extract_strided_slice %38 {offsets = [3, 0], sizes = [1, 256], strides = [1, 1]} : vector<8x256xf32> to vector<1x256xf32>
    %49 = vector.broadcast %48 : vector<1x256xf32> to vector<8x256xf32>
    %50 = arith.mulf %28, %49 : vector<8x256xf32>
    %51 = vector.extract_strided_slice %38 {offsets = [4, 0], sizes = [1, 256], strides = [1, 1]} : vector<8x256xf32> to vector<1x256xf32>
    %52 = vector.broadcast %51 : vector<1x256xf32> to vector<8x256xf32>
    %53 = arith.mulf %28, %52 : vector<8x256xf32>
    %54 = vector.extract_strided_slice %38 {offsets = [5, 0], sizes = [1, 256], strides = [1, 1]} : vector<8x256xf32> to vector<1x256xf32>
    %55 = vector.broadcast %54 : vector<1x256xf32> to vector<8x256xf32>
    %56 = arith.mulf %28, %55 : vector<8x256xf32>
    %57 = vector.extract_strided_slice %38 {offsets = [6, 0], sizes = [1, 256], strides = [1, 1]} : vector<8x256xf32> to vector<1x256xf32>
    %58 = vector.broadcast %57 : vector<1x256xf32> to vector<8x256xf32>
    %59 = arith.mulf %28, %58 : vector<8x256xf32>
    %60 = vector.extract_strided_slice %38 {offsets = [7, 0], sizes = [1, 256], strides = [1, 1]} : vector<8x256xf32> to vector<1x256xf32>
    %61 = vector.broadcast %60 : vector<1x256xf32> to vector<8x256xf32>
    %62 = arith.mulf %28, %61 : vector<8x256xf32>
    %63 = vector.extract_strided_slice %4 {offsets = [1, 0], sizes = [1, 256], strides = [1, 1]} : vector<2x256xf32> to vector<1x256xf32>
    %64 = vector.broadcast %63 : vector<1x256xf32> to vector<8x256xf32>
    %65 = arith.mulf %35, %64 : vector<8x256xf32>
    %66 = vector.extract_strided_slice %65 {offsets = [0, 0], sizes = [1, 256], strides = [1, 1]} : vector<8x256xf32> to vector<1x256xf32>
    %67 = vector.broadcast %66 : vector<1x256xf32> to vector<8x256xf32>
    %68 = arith.mulf %28, %67 : vector<8x256xf32>
    %69 = vector.extract_strided_slice %65 {offsets = [1, 0], sizes = [1, 256], strides = [1, 1]} : vector<8x256xf32> to vector<1x256xf32>
    %70 = vector.broadcast %69 : vector<1x256xf32> to vector<8x256xf32>
    %71 = arith.mulf %28, %70 : vector<8x256xf32>
    %72 = vector.extract_strided_slice %65 {offsets = [2, 0], sizes = [1, 256], strides = [1, 1]} : vector<8x256xf32> to vector<1x256xf32>
    %73 = vector.broadcast %72 : vector<1x256xf32> to vector<8x256xf32>
    %74 = arith.mulf %28, %73 : vector<8x256xf32>
    %75 = vector.extract_strided_slice %65 {offsets = [3, 0], sizes = [1, 256], strides = [1, 1]} : vector<8x256xf32> to vector<1x256xf32>
    %76 = vector.broadcast %75 : vector<1x256xf32> to vector<8x256xf32>
    %77 = arith.mulf %28, %76 : vector<8x256xf32>
    %78 = vector.extract_strided_slice %65 {offsets = [4, 0], sizes = [1, 256], strides = [1, 1]} : vector<8x256xf32> to vector<1x256xf32>
    %79 = vector.broadcast %78 : vector<1x256xf32> to vector<8x256xf32>
    %80 = arith.mulf %28, %79 : vector<8x256xf32>
    %81 = vector.extract_strided_slice %65 {offsets = [5, 0], sizes = [1, 256], strides = [1, 1]} : vector<8x256xf32> to vector<1x256xf32>
    %82 = vector.broadcast %81 : vector<1x256xf32> to vector<8x256xf32>
    %83 = arith.mulf %28, %82 : vector<8x256xf32>
    %84 = vector.extract_strided_slice %65 {offsets = [6, 0], sizes = [1, 256], strides = [1, 1]} : vector<8x256xf32> to vector<1x256xf32>
    %85 = vector.broadcast %84 : vector<1x256xf32> to vector<8x256xf32>
    %86 = arith.mulf %28, %85 : vector<8x256xf32>
    %87 = vector.extract_strided_slice %65 {offsets = [7, 0], sizes = [1, 256], strides = [1, 1]} : vector<8x256xf32> to vector<1x256xf32>
    %88 = vector.broadcast %87 : vector<1x256xf32> to vector<8x256xf32>
    %89 = arith.mulf %28, %88 : vector<8x256xf32>
    %90 = tpu.concatenate %41, %44, %47, %50, %53, %56, %59, %62, %68, %71, %74, %77, %80, %83, %86, %89 in 0 : vector<8x256xf32>, vector<8x256xf32>, vector<8x256xf32>, vector<8x256xf32>, vector<8x256xf32>, vector<8x256xf32>, vector<8x256xf32>, vector<8x256xf32>, vector<8x256xf32>, vector<8x256xf32>, vector<8x256xf32>, vector<8x256xf32>, vector<8x256xf32>, vector<8x256xf32>, vector<8x256xf32>, vector<8x256xf32> -> vector<128x256xf32>
    %c0_10 = arith.constant 0 : index
    %c0_11 = arith.constant 0 : index
    %91 = vector.load %arg2[%c0_10, %c0_11] : memref<64x128xf32, #tpu.memory_space<vmem>>, vector<64x128xf32>
    %cst_12 = arith.constant dense<0.000000e+00> : vector<64x256xf32>
    %92 = tpu.matmul %91, %90, %cst_12 {dimension_numbers = #tpu.dot_dimension_numbers<[1], [0], [0], [1], [0, 0, 1, 1], [], []>, precision = #tpu.contract_precision<fp32>} : vector<64x128xf32>, vector<128x256xf32>, vector<64x256xf32> -> vector<64x256xf32>
    %93 = vector.extract_strided_slice %92 {offsets = [0, 0], sizes = [32, 256], strides = [1, 1]} : vector<64x256xf32> to vector<32x256xf32>
    %94 = arith.mulf %93, %1 : vector<32x256xf32>
    %cst_13 = arith.constant dense<0.000000e+00> : vector<256xf32>
    %95 = vector.multi_reduction <add>, %94, %cst_13 [0] : vector<32x256xf32> to vector<256xf32>
    %96 = vector.shape_cast %95 : vector<256xf32> to vector<1x256xf32>
    %97 = vector.extract_strided_slice %5 {offsets = [0, 0], sizes = [1, 256], strides = [1, 1]} : vector<2x256xf32> to vector<1x256xf32>
    %98 = arith.addf %96, %97 : vector<1x256xf32>
    %c0_14 = arith.constant 0 : index
    %c0_15 = arith.constant 0 : index
    %99 = vector.load %arg3[%c0_14, %c0_15] : memref<2x256xf32, #tpu.memory_space<vmem>>, vector<1x256xf32>
    tpu.vector_store %arg3[%c0_14, %c0_15], %98 {strides = array<i32>} : memref<2x256xf32, #tpu.memory_space<vmem>>, vector<1x256xf32>,
    %100 = vector.extract_strided_slice %92 {offsets = [32, 0], sizes = [32, 256], strides = [1, 1]} : vector<64x256xf32> to vector<32x256xf32>
    %101 = arith.mulf %100, %1 : vector<32x256xf32>
    %cst_16 = arith.constant dense<0.000000e+00> : vector<256xf32>
    %102 = vector.multi_reduction <add>, %101, %cst_16 [0] : vector<32x256xf32> to vector<256xf32>
    %103 = vector.shape_cast %102 : vector<256xf32> to vector<1x256xf32>
    %104 = vector.extract_strided_slice %5 {offsets = [1, 0], sizes = [1, 256], strides = [1, 1]} : vector<2x256xf32> to vector<1x256xf32>
    %105 = arith.addf %103, %104 : vector<1x256xf32>
    %c1 = arith.constant 1 : index
    %c0_17 = arith.constant 0 : index
    %106 = vector.load %arg3[%c1, %c0_17] : memref<2x256xf32, #tpu.memory_space<vmem>>, vector<1x256xf32>
    tpu.vector_store %arg3[%c1, %c0_17], %105 {strides = array<i32>} : memref<2x256xf32, #tpu.memory_space<vmem>>, vector<1x256xf32>,
    return
  }
  func.func @transform_0(%arg0: i32) -> (i32, i32) {
    %c0_i32 = arith.constant 0 : i32
    %c0_i32_0 = arith.constant 0 : i32
    return %c0_i32, %arg0 : i32, i32
  }
  func.func @transform_1(%arg0: i32) -> (i32, i32) {
    %c0_i32 = arith.constant 0 : i32
    %c0_i32_0 = arith.constant 0 : i32
    %c0_i32_1 = arith.constant 0 : i32
    return %c0_i32, %c0_i32_0 : i32, i32
  }
  func.func @transform_2(%arg0: i32) -> (i32, i32) {
    %c0_i32 = arith.constant 0 : i32
    %c0_i32_0 = arith.constant 0 : i32
    return %c0_i32, %arg0 : i32, i32
  }
}

</mosaic_0001>

<llo_original>
// kernel: forward.1
$region0: #{forward.1}
  #allocation0 [shape = 'u32[]', space=smem, size = 0x4, offset = 0x4, fixed_abs, tag = 'smem constant byte address 0x4 - core index']
  #allocation1 [shape = 'u32[72,128]{1,0:T(1,128)}', space=vmem, size = 0x9000, scoped, tag = 'internal scratch']
  %s0 = inlined_call_operand.vmem [shape: f32[38,256], index: 0, kind: input, shape index: {}]
  %s1 = inlined_call_operand.vmem [shape: f32[64,128], index: 1, kind: input, shape index: {}]
  %s2 = inlined_call_operand.hbm [shape: f32[2,256], index: 2, kind: output, shape index: {}]
  %s3 = sld [smem:[#allocation0]]
  $region18: #{forward.1} parent=0
    _
  %s5 = ssub.s32 1, %s3
  %s6 = scalar_select 0, %s5, %s3
  $region1: #{forward.1} parent=0
    #allocation2 [shape = 'u8[2048]{0}', space=vmem, size = 0x800, scoped, tag = 'output window, operand 0, single buffered']
    #allocation3 [shape = 's32[1]{0}', space=sflag, size = 0x4, scoped, tag = 'scoped memory for forward.1']
    %7 = vsyncpa [#allocation3], 0
    // Predicated region
    $region2: #{forward.1} parent=1 // pred_check
      _
    $region3: #{forward.1} parent=1 // pred_check_branch
      %9 = sbr.rel (0) target = $region5
    $region4: #{forward.1} parent=1 // pred_region
      _
    $region5: #{forward.1} parent=1 // pred_fallthru
      _
    // Predicated region
    $region6: #{forward.1} parent=1 // pred_check
      _
    $region7: #{forward.1} parent=1 // pred_check_branch
      %11 = sbr.rel (0) target = $region9
    $region8: #{forward.1} parent=1 // pred_region
      _
    $region9: #{forward.1} parent=1 // pred_fallthru
      _
    %v12 = vld [vmem:[%s0] sm:$0xff]
    %v13 = vld [vmem:[%s0 + $0x8] sm:$0xff]
    %v14 = vld [vmem:[%s0 + $0x10] sm:$0xff]
    %v15 = vld [vmem:[%s0 + $0x18] sm:$0xff]
    %v16 = vld [vmem:[%s0 + $0x20] sm:$0xff]
    %v17 = vld [vmem:[%s0 + $0x28] sm:$0xff]
    %v18 = vld [vmem:[%s0 + $0x30] sm:$0xff]
    %v19 = vld [vmem:[%s0 + $0x38] sm:$0xff]
    %v20 = vld [vmem:[%s0 + $0x40] sm:$0x3f]
    %v21 = vld [vmem:[%s0 + $0x48] sm:$0x3f]
    %v22 = vadd.f32 %v20, 1.0
    %v23 = vadd.f32 %v21, 1.0
    %v24 = vmul.f32 %v22, 4.0
    %v25 = vmul.f32 %v23, 4.0
    %v26 = vsub.f32 %v24, 0.5
    %v27 = vsub.f32 %v25, 0.5
    %v28 = vlaneseq
    %v29 = vshrl.u32 %v28, 7
    %v30 = vcvt.s32.f32 %v29
    %v31 = vperm.slane %v26, 0
    %v32 = vperm.slane %v27, 0
    %v33 = vsub.f32 %v30, %v31
    %v34 = vsub.f32 %v30, %v32
    %v35 = vand.u32 2147483647, %v33
    %v36 = vand.u32 2147483647, %v34
    %v37 = vsub.f32 1.0, %v35
    %v38 = vsub.f32 1.0, %v36
    %v39 = vmax.f32 %v37, 0.0
    %v40 = vmax.f32 %v38, 0.0
    %v41 = vperm.slane %v26, 1
    %v42 = vperm.slane %v27, 1
    %v43 = vsub.f32 %v30, %v41
    %v44 = vsub.f32 %v30, %v42
    %v45 = vand.u32 2147483647, %v43
    %v46 = vand.u32 2147483647, %v44
    %v47 = vsub.f32 1.0, %v45
    %v48 = vsub.f32 1.0, %v46
    %v49 = vmax.f32 %v47, 0.0
    %v50 = vmax.f32 %v48, 0.0
    %v51 = vperm.slane %v20, 2
    %v52 = vperm.slane %v21, 2
    %v53 = vmul.f32 %v49, %v51
    %v54 = vmul.f32 %v50, %v52
    %v55 = vperm.slane %v53, 0
    %v56 = vperm.slane %v54, 0
    %v57 = vmul.f32 %v39, %v55
    %v58 = vmul.f32 %v40, %v56
    %v59 = vperm.slane %v53, 1
    %v60 = vperm.slane %v54, 1
    %v61 = vmul.f32 %v39, %v59
    %v62 = vmul.f32 %v40, %v60
    %v63 = vperm.slane %v53, 2
    %v64 = vperm.slane %v54, 2
    %v65 = vmul.f32 %v39, %v63
    %v66 = vmul.f32 %v40, %v64
    %v67 = vperm.slane %v53, 3
    %v68 = vperm.slane %v54, 3
    %v69 = vmul.f32 %v39, %v67
    %v70 = vmul.f32 %v40, %v68
    %v71 = vperm.slane %v53, 4
    %v72 = vperm.slane %v54, 4
    %v73 = vmul.f32 %v39, %v71
    %v74 = vmul.f32 %v40, %v72
    %v75 = vperm.slane %v53, 5
    %v76 = vperm.slane %v54, 5
    %v77 = vmul.f32 %v39, %v75
    %v78 = vmul.f32 %v40, %v76
    %v79 = vperm.slane %v53, 6
    %v80 = vperm.slane %v54, 6
    %v81 = vmul.f32 %v39, %v79
    %v82 = vmul.f32 %v40, %v80
    %v83 = vperm.slane %v53, 7
    %v84 = vperm.slane %v54, 7
    %v85 = vmul.f32 %v39, %v83
    %v86 = vmul.f32 %v40, %v84
    %v87 = vperm.slane %v20, 3
    %v88 = vperm.slane %v21, 3
    %v89 = vmul.f32 %v49, %v87
    %v90 = vmul.f32 %v50, %v88
    %v91 = vperm.slane %v89, 0
    %v92 = vperm.slane %v90, 0
    %v93 = vmul.f32 %v39, %v91
    %v94 = vmul.f32 %v40, %v92
    %v95 = vperm.slane %v89, 1
    %v96 = vperm.slane %v90, 1
    %v97 = vmul.f32 %v39, %v95
    %v98 = vmul.f32 %v40, %v96
    %v99 = vperm.slane %v89, 2
    %v100 = vperm.slane %v90, 2
    %v101 = vmul.f32 %v39, %v99
    %v102 = vmul.f32 %v40, %v100
    %v103 = vperm.slane %v89, 3
    %v104 = vperm.slane %v90, 3
    %v105 = vmul.f32 %v39, %v103
    %v106 = vmul.f32 %v40, %v104
    %v107 = vperm.slane %v89, 4
    %v108 = vperm.slane %v90, 4
    %v109 = vmul.f32 %v39, %v107
    %v110 = vmul.f32 %v40, %v108
    %v111 = vperm.slane %v89, 5
    %v112 = vperm.slane %v90, 5
    %v113 = vmul.f32 %v39, %v111
    %v114 = vmul.f32 %v40, %v112
    %v115 = vperm.slane %v89, 6
    %v116 = vperm.slane %v90, 6
    %v117 = vmul.f32 %v39, %v115
    %v118 = vmul.f32 %v40, %v116
    %v119 = vperm.slane %v89, 7
    %v120 = vperm.slane %v90, 7
    %v121 = vmul.f32 %v39, %v119
    %v122 = vmul.f32 %v40, %v120
    %v123 = vld [vmem:[%s1] sm:$0xff]
    %v124 = vld [vmem:[%s1 + $0x8] sm:$0xff]
    %v125 = vld [vmem:[%s1 + $0x10] sm:$0xff]
    %v126 = vld [vmem:[%s1 + $0x18] sm:$0xff]
    %v127 = vld [vmem:[%s1 + $0x20] sm:$0xff]
    %v128 = vld [vmem:[%s1 + $0x28] sm:$0xff]
    %v129 = vld [vmem:[%s1 + $0x30] sm:$0xff]
    %v130 = vld [vmem:[%s1 + $0x38] sm:$0xff]
    %v131 = vand.u32 %v121, 4294901760
    %132 = vmatpush.msra.mxu0 %v131
    %v133 = vand.u32 %v117, 4294901760
    %134 = vmatpush.msra.mxu0 %v133
    %v135 = vand.u32 %v113, 4294901760
    %136 = vmatpush.msra.mxu0 %v135
    %v137 = vand.u32 %v109, 4294901760
    %138 = vmatpush.msra.mxu0 %v137
    %v139 = vand.u32 %v105, 4294901760
    %140 = vmatpush.msra.mxu0 %v139
    %v141 = vand.u32 %v101, 4294901760
    %142 = vmatpush.msra.mxu0 %v141
    %v143 = vand.u32 %v97, 4294901760
    %144 = vmatpush.msra.mxu0 %v143
    %v145 = vand.u32 %v93, 4294901760
    %146 = vmatpush.msra.mxu0 %v145
    %v147 = vand.u32 %v85, 4294901760
    %148 = vmatpush.msra.mxu0 %v147
    %v149 = vand.u32 %v81, 4294901760
    %150 = vmatpush.msra.mxu0 %v149
    %v151 = vand.u32 %v77, 4294901760
    %152 = vmatpush.msra.mxu0 %v151
    %v153 = vand.u32 %v73, 4294901760
    %154 = vmatpush.msra.mxu0 %v153
    %v155 = vand.u32 %v69, 4294901760
    %156 = vmatpush.msra.mxu0 %v155
    %v157 = vand.u32 %v65, 4294901760
    %158 = vmatpush.msra.mxu0 %v157
    %v159 = vand.u32 %v61, 4294901760
    %160 = vmatpush.msra.mxu0 %v159
    %v161 = vand.u32 %v57, 4294901760
    %162 = vmatpush.msra.mxu0 %v161
    %v163 = vand.u32 %v123, 4294901760
    %v164 = vsub.f32 %v123, %v163
    %v165 = vand.u32 %v164, 4294901760
    %v166 = vsub.f32 %v164, %v165
    %v167 = vand.u32 %v166, 4294901760
    %168 = vmatmul.f32.gmra.mxu0 %v167
    %v169 = vpop.f32.mrf.mxu0
    %v170 = vadd.f32 0.0, %v169
    %v171 = vand.u32 %v124, 4294901760
    %v172 = vsub.f32 %v124, %v171
    %v173 = vand.u32 %v172, 4294901760
    %v174 = vsub.f32 %v172, %v173
    %v175 = vand.u32 %v174, 4294901760
    %176 = vmatmul.f32.gmra.mxu0 %v175
    %v177 = vpop.f32.mrf.mxu0
    %v178 = vadd.f32 0.0, %v177
    %v179 = vand.u32 %v125, 4294901760
    %v180 = vsub.f32 %v125, %v179
    %v181 = vand.u32 %v180, 4294901760
    %v182 = vsub.f32 %v180, %v181
    %v183 = vand.u32 %v182, 4294901760
    %184 = vmatmul.f32.gmra.mxu0 %v183
    %v185 = vpop.f32.mrf.mxu0
    %v186 = vadd.f32 0.0, %v185
    %v187 = vand.u32 %v126, 4294901760
    %v188 = vsub.f32 %v126, %v187
    %v189 = vand.u32 %v188, 4294901760
    %v190 = vsub.f32 %v188, %v189
    %v191 = vand.u32 %v190, 4294901760
    %192 = vmatmul.f32.gmra.mxu0 %v191
    %v193 = vpop.f32.mrf.mxu0
    %v194 = vadd.f32 0.0, %v193
    %v195 = vand.u32 %v127, 4294901760
    %v196 = vsub.f32 %v127, %v195
    %v197 = vand.u32 %v196, 4294901760
    %v198 = vsub.f32 %v196, %v197
    %v199 = vand.u32 %v198, 4294901760
    %200 = vmatmul.f32.gmra.mxu0 %v199
    %v201 = vpop.f32.mrf.mxu0
    %v202 = vadd.f32 0.0, %v201
    %v203 = vand.u32 %v128, 4294901760
    %v204 = vsub.f32 %v128, %v203
    %v205 = vand.u32 %v204, 4294901760
    %v206 = vsub.f32 %v204, %v205
    %v207 = vand.u32 %v206, 4294901760
    %208 = vmatmul.f32.gmra.mxu0 %v207
    %v209 = vpop.f32.mrf.mxu0
    %v210 = vadd.f32 0.0, %v209
    %v211 = vand.u32 %v129, 4294901760
    %v212 = vsub.f32 %v129, %v211
    %v213 = vand.u32 %v212, 4294901760
    %v214 = vsub.f32 %v212, %v213
    %v215 = vand.u32 %v214, 4294901760
    %216 = vmatmul.f32.gmra.mxu0 %v215
    %v217 = vpop.f32.mrf.mxu0
    %v218 = vadd.f32 0.0, %v217
    %v219 = vand.u32 %v130, 4294901760
    %v220 = vsub.f32 %v130, %v219
    %v221 = vand.u32 %v220, 4294901760
    %v222 = vsub.f32 %v220, %v221
    %v223 = vand.u32 %v222, 4294901760
    %224 = vmatmul.f32.gmra.mxu0 %v223
    %v225 = vpop.f32.mrf.mxu0
    %v226 = vadd.f32 0.0, %v225
    %227 = vdwg.mxu0
    %v228 = vand.u32 %v121, 4294901760
    %v229 = vsub.f32 %v121, %v228
    %v230 = vand.u32 %v229, 4294901760
    %v231 = vsub.f32 %v229, %v230
    %v232 = vand.u32 %v231, 4294901760
    %233 = vmatpush.msra.mxu0 %v232
    %v234 = vand.u32 %v117, 4294901760
    %v235 = vsub.f32 %v117, %v234
    %v236 = vand.u32 %v235, 4294901760
    %v237 = vsub.f32 %v235, %v236
    %v238 = vand.u32 %v237, 4294901760
    %239 = vmatpush.msra.mxu0 %v238
    %v240 = vand.u32 %v113, 4294901760
    %v241 = vsub.f32 %v113, %v240
    %v242 = vand.u32 %v241, 4294901760
    %v243 = vsub.f32 %v241, %v242
    %v244 = vand.u32 %v243, 4294901760
    %245 = vmatpush.msra.mxu0 %v244
    %v246 = vand.u32 %v109, 4294901760
    %v247 = vsub.f32 %v109, %v246
    %v248 = vand.u32 %v247, 4294901760
    %v249 = vsub.f32 %v247, %v248
    %v250 = vand.u32 %v249, 4294901760
    %251 = vmatpush.msra.mxu0 %v250
    %v252 = vand.u32 %v105, 4294901760
    %v253 = vsub.f32 %v105, %v252
    %v254 = vand.u32 %v253, 4294901760
    %v255 = vsub.f32 %v253, %v254
    %v256 = vand.u32 %v255, 4294901760
    %257 = vmatpush.msra.mxu0 %v256
    %v258 = vand.u32 %v101, 4294901760
    %v259 = vsub.f32 %v101, %v258
    %v260 = vand.u32 %v259, 4294901760
    %v261 = vsub.f32 %v259, %v260
    %v262 = vand.u32 %v261, 4294901760
    %263 = vmatpush.msra.mxu0 %v262
    %v264 = vand.u32 %v97, 4294901760
    %v265 = vsub.f32 %v97, %v264
    %v266 = vand.u32 %v265, 4294901760
    %v267 = vsub.f32 %v265, %v266
    %v268 = vand.u32 %v267, 4294901760
    %269 = vmatpush.msra.mxu0 %v268
    %v270 = vand.u32 %v93, 4294901760
    %v271 = vsub.f32 %v93, %v270
    %v272 = vand.u32 %v271, 4294901760
    %v273 = vsub.f32 %v271, %v272
    %v274 = vand.u32 %v273, 4294901760
    %275 = vmatpush.msra.mxu0 %v274
    %v276 = vand.u32 %v85, 4294901760
    %v277 = vsub.f32 %v85, %v276
    %v278 = vand.u32 %v277, 4294901760
    %v279 = vsub.f32 %v277, %v278
    %v280 = vand.u32 %v279, 4294901760
    %281 = vmatpush.msra.mxu0 %v280
    %v282 = vand.u32 %v81, 4294901760
    %v283 = vsub.f32 %v81, %v282
    %v284 = vand.u32 %v283, 4294901760
    %v285 = vsub.f32 %v283, %v284
    %v286 = vand.u32 %v285, 4294901760
    %287 = vmatpush.msra.mxu0 %v286
    %v288 = vand.u32 %v77, 4294901760
    %v289 = vsub.f32 %v77, %v288
    %v290 = vand.u32 %v289, 4294901760
    %v291 = vsub.f32 %v289, %v290
    %v292 = vand.u32 %v291, 4294901760
    %293 = vmatpush.msra.mxu0 %v292
    %v294 = vand.u32 %v73, 4294901760
    %v295 = vsub.f32 %v73, %v294
    %v296 = vand.u32 %v295, 4294901760
    %v297 = vsub.f32 %v295, %v296
    %v298 = vand.u32 %v297, 4294901760
    %299 = vmatpush.msra.mxu0 %v298
    %v300 = vand.u32 %v69, 4294901760
    %v301 = vsub.f32 %v69, %v300
    %v302 = vand.u32 %v301, 4294901760
    %v303 = vsub.f32 %v301, %v302
    %v304 = vand.u32 %v303, 4294901760
    %305 = vmatpush.msra.mxu0 %v304
    %v306 = vand.u32 %v65, 4294901760
    %v307 = vsub.f32 %v65, %v306
    %v308 = vand.u32 %v307, 4294901760
    %v309 = vsub.f32 %v307, %v308
    %v310 = vand.u32 %v309, 4294901760
    %311 = vmatpush.msra.mxu0 %v310
    %v312 = vand.u32 %v61, 4294901760
    %v313 = vsub.f32 %v61, %v312
    %v314 = vand.u32 %v313, 4294901760
    %v315 = vsub.f32 %v313, %v314
    %v316 = vand.u32 %v315, 4294901760
    %317 = vmatpush.msra.mxu0 %v316
    %v318 = vand.u32 %v57, 4294901760
    %v319 = vsub.f32 %v57, %v318
    %v320 = vand.u32 %v319, 4294901760
    %v321 = vsub.f32 %v319, %v320
    %v322 = vand.u32 %v321, 4294901760
    %323 = vmatpush.msra.mxu0 %v322
    %v324 = vand.u32 %v123, 4294901760
    %325 = vmatmul.f32.gmra.mxu0 %v324
    %v326 = vpop.f32.mrf.mxu0
    %v327 = vadd.f32 %v170, %v326
    %v328 = vand.u32 %v124, 4294901760
    %329 = vmatmul.f32.gmra.mxu0 %v328
    %v330 = vpop.f32.mrf.mxu0
    %v331 = vadd.f32 %v178, %v330
    %v332 = vand.u32 %v125, 4294901760
    %333 = vmatmul.f32.gmra.mxu0 %v332
    %v334 = vpop.f32.mrf.mxu0
    %v335 = vadd.f32 %v186, %v334
    %v336 = vand.u32 %v126, 4294901760
    %337 = vmatmul.f32.gmra.mxu0 %v336
    %v338 = vpop.f32.mrf.mxu0
    %v339 = vadd.f32 %v194, %v338
    %v340 = vand.u32 %v127, 4294901760
    %341 = vmatmul.f32.gmra.mxu0 %v340
    %v342 = vpop.f32.mrf.mxu0
    %v343 = vadd.f32 %v202, %v342
    %v344 = vand.u32 %v128, 4294901760
    %345 = vmatmul.f32.gmra.mxu0 %v344
    %v346 = vpop.f32.mrf.mxu0
    %v347 = vadd.f32 %v210, %v346
    %v348 = vand.u32 %v129, 4294901760
    %349 = vmatmul.f32.gmra.mxu0 %v348
    %v350 = vpop.f32.mrf.mxu0
    %v351 = vadd.f32 %v218, %v350
    %v352 = vand.u32 %v130, 4294901760
    %353 = vmatmul.f32.gmra.mxu0 %v352
    %v354 = vpop.f32.mrf.mxu0
    %v355 = vadd.f32 %v226, %v354
    %356 = vdwg.mxu0
    %v357 = vand.u32 %v121, 4294901760
    %v358 = vsub.f32 %v121, %v357
    %359 = vmatpush.msra.mxu0 %v358
    %v360 = vand.u32 %v117, 4294901760
    %v361 = vsub.f32 %v117, %v360
    %362 = vmatpush.msra.mxu0 %v361
    %v363 = vand.u32 %v113, 4294901760
    %v364 = vsub.f32 %v113, %v363
    %365 = vmatpush.msra.mxu0 %v364
    %v366 = vand.u32 %v109, 4294901760
    %v367 = vsub.f32 %v109, %v366
    %368 = vmatpush.msra.mxu0 %v367
    %v369 = vand.u32 %v105, 4294901760
    %v370 = vsub.f32 %v105, %v369
    %371 = vmatpush.msra.mxu0 %v370
    %v372 = vand.u32 %v101, 4294901760
    %v373 = vsub.f32 %v101, %v372
    %374 = vmatpush.msra.mxu0 %v373
    %v375 = vand.u32 %v97, 4294901760
    %v376 = vsub.f32 %v97, %v375
    %377 = vmatpush.msra.mxu0 %v376
    %v378 = vand.u32 %v93, 4294901760
    %v379 = vsub.f32 %v93, %v378
    %380 = vmatpush.msra.mxu0 %v379
    %v381 = vand.u32 %v85, 4294901760
    %v382 = vsub.f32 %v85, %v381
    %383 = vmatpush.msra.mxu0 %v382
    %v384 = vand.u32 %v81, 4294901760
    %v385 = vsub.f32 %v81, %v384
    %386 = vmatpush.msra.mxu0 %v385
    %v387 = vand.u32 %v77, 4294901760
    %v388 = vsub.f32 %v77, %v387
    %389 = vmatpush.msra.mxu0 %v388
    %v390 = vand.u32 %v73, 4294901760
    %v391 = vsub.f32 %v73, %v390
    %392 = vmatpush.msra.mxu0 %v391
    %v393 = vand.u32 %v69, 4294901760
    %v394 = vsub.f32 %v69, %v393
    %395 = vmatpush.msra.mxu0 %v394
    %v396 = vand.u32 %v65, 4294901760
    %v397 = vsub.f32 %v65, %v396
    %398 = vmatpush.msra.mxu0 %v397
    %v399 = vand.u32 %v61, 4294901760
    %v400 = vsub.f32 %v61, %v399
    %401 = vmatpush.msra.mxu0 %v400
    %v402 = vand.u32 %v57, 4294901760
    %v403 = vsub.f32 %v57, %v402
    %404 = vmatpush.msra.mxu0 %v403
    %v405 = vand.u32 %v123, 4294901760
    %v406 = vsub.f32 %v123, %v405
    %407 = vmatmul.f32.gmra.mxu0 %v406
    %v408 = vpop.f32.mrf.mxu0
    %v409 = vadd.f32 %v327, %v408
    %v410 = vand.u32 %v124, 4294901760
    %v411 = vsub.f32 %v124, %v410
    %412 = vmatmul.f32.gmra.mxu0 %v411
    %v413 = vpop.f32.mrf.mxu0
    %v414 = vadd.f32 %v331, %v413
    %v415 = vand.u32 %v125, 4294901760
    %v416 = vsub.f32 %v125, %v415
    %417 = vmatmul.f32.gmra.mxu0 %v416
    %v418 = vpop.f32.mrf.mxu0
    %v419 = vadd.f32 %v335, %v418
    %v420 = vand.u32 %v126, 4294901760
    %v421 = vsub.f32 %v126, %v420
    %422 = vmatmul.f32.gmra.mxu0 %v421
    %v423 = vpop.f32.mrf.mxu0
    %v424 = vadd.f32 %v339, %v423
    %v425 = vand.u32 %v127, 4294901760
    %v426 = vsub.f32 %v127, %v425
    %427 = vmatmul.f32.gmra.mxu0 %v426
    %v428 = vpop.f32.mrf.mxu0
    %v429 = vadd.f32 %v343, %v428
    %v430 = vand.u32 %v128, 4294901760
    %v431 = vsub.f32 %v128, %v430
    %432 = vmatmul.f32.gmra.mxu0 %v431
    %v433 = vpop.f32.mrf.mxu0
    %v434 = vadd.f32 %v347, %v433
    %v435 = vand.u32 %v129, 4294901760
    %v436 = vsub.f32 %v129, %v435
    %437 = vmatmul.f32.gmra.mxu0 %v436
    %v438 = vpop.f32.mrf.mxu0
    %v439 = vadd.f32 %v351, %v438
    %v440 = vand.u32 %v130, 4294901760
    %v441 = vsub.f32 %v130, %v440
    %442 = vmatmul.f32.gmra.mxu0 %v441
    %v443 = vpop.f32.mrf.mxu0
    %v444 = vadd.f32 %v355, %v443
    %445 = vdwg.mxu0
    %v446 = vand.u32 %v121, 4294901760
    %447 = vmatpush.msra.mxu0 %v446
    %v448 = vand.u32 %v117, 4294901760
    %449 = vmatpush.msra.mxu0 %v448
    %v450 = vand.u32 %v113, 4294901760
    %451 = vmatpush.msra.mxu0 %v450
    %v452 = vand.u32 %v109, 4294901760
    %453 = vmatpush.msra.mxu0 %v452
    %v454 = vand.u32 %v105, 4294901760
    %455 = vmatpush.msra.mxu0 %v454
    %v456 = vand.u32 %v101, 4294901760
    %457 = vmatpush.msra.mxu0 %v456
    %v458 = vand.u32 %v97, 4294901760
    %459 = vmatpush.msra.mxu0 %v458
    %v460 = vand.u32 %v93, 4294901760
    %461 = vmatpush.msra.mxu0 %v460
    %v462 = vand.u32 %v85, 4294901760
    %463 = vmatpush.msra.mxu0 %v462
    %v464 = vand.u32 %v81, 4294901760
    %465 = vmatpush.msra.mxu0 %v464
    %v466 = vand.u32 %v77, 4294901760
    %467 = vmatpush.msra.mxu0 %v466
    %v468 = vand.u32 %v73, 4294901760
    %469 = vmatpush.msra.mxu0 %v468
    %v470 = vand.u32 %v69, 4294901760
    %471 = vmatpush.msra.mxu0 %v470
    %v472 = vand.u32 %v65, 4294901760
    %473 = vmatpush.msra.mxu0 %v472
    %v474 = vand.u32 %v61, 4294901760
    %475 = vmatpush.msra.mxu0 %v474
    %v476 = vand.u32 %v57, 4294901760
    %477 = vmatpush.msra.mxu0 %v476
    %v478 = vand.u32 %v123, 4294901760
    %v479 = vsub.f32 %v123, %v478
    %v480 = vand.u32 %v479, 4294901760
    %481 = vmatmul.f32.gmra.mxu0 %v480
    %v482 = vpop.f32.mrf.mxu0
    %v483 = vadd.f32 %v409, %v482
    %v484 = vand.u32 %v124, 4294901760
    %v485 = vsub.f32 %v124, %v484
    %v486 = vand.u32 %v485, 4294901760
    %487 = vmatmul.f32.gmra.mxu0 %v486
    %v488 = vpop.f32.mrf.mxu0
    %v489 = vadd.f32 %v414, %v488
    %v490 = vand.u32 %v125, 4294901760
    %v491 = vsub.f32 %v125, %v490
    %v492 = vand.u32 %v491, 4294901760
    %493 = vmatmul.f32.gmra.mxu0 %v492
    %v494 = vpop.f32.mrf.mxu0
    %v495 = vadd.f32 %v419, %v494
    %v496 = vand.u32 %v126, 4294901760
    %v497 = vsub.f32 %v126, %v496
    %v498 = vand.u32 %v497, 4294901760
    %499 = vmatmul.f32.gmra.mxu0 %v498
    %v500 = vpop.f32.mrf.mxu0
    %v501 = vadd.f32 %v424, %v500
    %v502 = vand.u32 %v127, 4294901760
    %v503 = vsub.f32 %v127, %v502
    %v504 = vand.u32 %v503, 4294901760
    %505 = vmatmul.f32.gmra.mxu0 %v504
    %v506 = vpop.f32.mrf.mxu0
    %v507 = vadd.f32 %v429, %v506
    %v508 = vand.u32 %v128, 4294901760
    %v509 = vsub.f32 %v128, %v508
    %v510 = vand.u32 %v509, 4294901760
    %511 = vmatmul.f32.gmra.mxu0 %v510
    %v512 = vpop.f32.mrf.mxu0
    %v513 = vadd.f32 %v434, %v512
    %v514 = vand.u32 %v129, 4294901760
    %v515 = vsub.f32 %v129, %v514
    %v516 = vand.u32 %v515, 4294901760
    %517 = vmatmul.f32.gmra.mxu0 %v516
    %v518 = vpop.f32.mrf.mxu0
    %v519 = vadd.f32 %v439, %v518
    %v520 = vand.u32 %v130, 4294901760
    %v521 = vsub.f32 %v130, %v520
    %v522 = vand.u32 %v521, 4294901760
    %523 = vmatmul.f32.gmra.mxu0 %v522
    %v524 = vpop.f32.mrf.mxu0
    %v525 = vadd.f32 %v444, %v524
    %526 = vdwg.mxu0
    %v527 = vand.u32 %v121, 4294901760
    %v528 = vsub.f32 %v121, %v527
    %v529 = vand.u32 %v528, 4294901760
    %530 = vmatpush.msra.mxu0 %v529
    %v531 = vand.u32 %v117, 4294901760
    %v532 = vsub.f32 %v117, %v531
    %v533 = vand.u32 %v532, 4294901760
    %534 = vmatpush.msra.mxu0 %v533
    %v535 = vand.u32 %v113, 4294901760
    %v536 = vsub.f32 %v113, %v535
    %v537 = vand.u32 %v536, 4294901760
    %538 = vmatpush.msra.mxu0 %v537
    %v539 = vand.u32 %v109, 4294901760
    %v540 = vsub.f32 %v109, %v539
    %v541 = vand.u32 %v540, 4294901760
    %542 = vmatpush.msra.mxu0 %v541
    %v543 = vand.u32 %v105, 4294901760
    %v544 = vsub.f32 %v105, %v543
    %v545 = vand.u32 %v544, 4294901760
    %546 = vmatpush.msra.mxu0 %v545
    %v547 = vand.u32 %v101, 4294901760
    %v548 = vsub.f32 %v101, %v547
    %v549 = vand.u32 %v548, 4294901760
    %550 = vmatpush.msra.mxu0 %v549
    %v551 = vand.u32 %v97, 4294901760
    %v552 = vsub.f32 %v97, %v551
    %v553 = vand.u32 %v552, 4294901760
    %554 = vmatpush.msra.mxu0 %v553
    %v555 = vand.u32 %v93, 4294901760
    %v556 = vsub.f32 %v93, %v555
    %v557 = vand.u32 %v556, 4294901760
    %558 = vmatpush.msra.mxu0 %v557
    %v559 = vand.u32 %v85, 4294901760
    %v560 = vsub.f32 %v85, %v559
    %v561 = vand.u32 %v560, 4294901760
    %562 = vmatpush.msra.mxu0 %v561
    %v563 = vand.u32 %v81, 4294901760
    %v564 = vsub.f32 %v81, %v563
    %v565 = vand.u32 %v564, 4294901760
    %566 = vmatpush.msra.mxu0 %v565
    %v567 = vand.u32 %v77, 4294901760
    %v568 = vsub.f32 %v77, %v567
    %v569 = vand.u32 %v568, 4294901760
    %570 = vmatpush.msra.mxu0 %v569
    %v571 = vand.u32 %v73, 4294901760
    %v572 = vsub.f32 %v73, %v571
    %v573 = vand.u32 %v572, 4294901760
    %574 = vmatpush.msra.mxu0 %v573
    %v575 = vand.u32 %v69, 4294901760
    %v576 = vsub.f32 %v69, %v575
    %v577 = vand.u32 %v576, 4294901760
    %578 = vmatpush.msra.mxu0 %v577
    %v579 = vand.u32 %v65, 4294901760
    %v580 = vsub.f32 %v65, %v579
    %v581 = vand.u32 %v580, 4294901760
    %582 = vmatpush.msra.mxu0 %v581
    %v583 = vand.u32 %v61, 4294901760
    %v584 = vsub.f32 %v61, %v583
    %v585 = vand.u32 %v584, 4294901760
    %586 = vmatpush.msra.mxu0 %v585
    %v587 = vand.u32 %v57, 4294901760
    %v588 = vsub.f32 %v57, %v587
    %v589 = vand.u32 %v588, 4294901760
    %590 = vmatpush.msra.mxu0 %v589
    %v591 = vand.u32 %v123, 4294901760
    %592 = vmatmul.f32.gmra.mxu0 %v591
    %v593 = vpop.f32.mrf.mxu0
    %v594 = vadd.f32 %v483, %v593
    %v595 = vand.u32 %v124, 4294901760
    %596 = vmatmul.f32.gmra.mxu0 %v595
    %v597 = vpop.f32.mrf.mxu0
    %v598 = vadd.f32 %v489, %v597
    %v599 = vand.u32 %v125, 4294901760
    %600 = vmatmul.f32.gmra.mxu0 %v599
    %v601 = vpop.f32.mrf.mxu0
    %v602 = vadd.f32 %v495, %v601
    %v603 = vand.u32 %v126, 4294901760
    %604 = vmatmul.f32.gmra.mxu0 %v603
    %v605 = vpop.f32.mrf.mxu0
    %v606 = vadd.f32 %v501, %v605
    %v607 = vand.u32 %v127, 4294901760
    %608 = vmatmul.f32.gmra.mxu0 %v607
    %v609 = vpop.f32.mrf.mxu0
    %v610 = vadd.f32 %v507, %v609
    %v611 = vand.u32 %v128, 4294901760
    %612 = vmatmul.f32.gmra.mxu0 %v611
    %v613 = vpop.f32.mrf.mxu0
    %v614 = vadd.f32 %v513, %v613
    %v615 = vand.u32 %v129, 4294901760
    %616 = vmatmul.f32.gmra.mxu0 %v615
    %v617 = vpop.f32.mrf.mxu0
    %v618 = vadd.f32 %v519, %v617
    %v619 = vand.u32 %v130, 4294901760
    %620 = vmatmul.f32.gmra.mxu0 %v619
    %v621 = vpop.f32.mrf.mxu0
    %v622 = vadd.f32 %v525, %v621
    %623 = vdwg.mxu0
    %v624 = vand.u32 %v121, 4294901760
    %625 = vmatpush.msra.mxu0 %v624
    %v626 = vand.u32 %v117, 4294901760
    %627 = vmatpush.msra.mxu0 %v626
    %v628 = vand.u32 %v113, 4294901760
    %629 = vmatpush.msra.mxu0 %v628
    %v630 = vand.u32 %v109, 4294901760
    %631 = vmatpush.msra.mxu0 %v630
    %v632 = vand.u32 %v105, 4294901760
    %633 = vmatpush.msra.mxu0 %v632
    %v634 = vand.u32 %v101, 4294901760
    %635 = vmatpush.msra.mxu0 %v634
    %v636 = vand.u32 %v97, 4294901760
    %637 = vmatpush.msra.mxu0 %v636
    %v638 = vand.u32 %v93, 4294901760
    %639 = vmatpush.msra.mxu0 %v638
    %v640 = vand.u32 %v85, 4294901760
    %641 = vmatpush.msra.mxu0 %v640
    %v642 = vand.u32 %v81, 4294901760
    %643 = vmatpush.msra.mxu0 %v642
    %v644 = vand.u32 %v77, 4294901760
    %645 = vmatpush.msra.mxu0 %v644
    %v646 = vand.u32 %v73, 4294901760
    %647 = vmatpush.msra.mxu0 %v646
    %v648 = vand.u32 %v69, 4294901760
    %649 = vmatpush.msra.mxu0 %v648
    %v650 = vand.u32 %v65, 4294901760
    %651 = vmatpush.msra.mxu0 %v650
    %v652 = vand.u32 %v61, 4294901760
    %653 = vmatpush.msra.mxu0 %v652
    %v654 = vand.u32 %v57, 4294901760
    %655 = vmatpush.msra.mxu0 %v654
    %v656 = vand.u32 %v123, 4294901760
    %657 = vmatmul.f32.gmra.mxu0 %v656
    %v658 = vpop.f32.mrf.mxu0
    %v659 = vadd.f32 %v594, %v658
    %v660 = vand.u32 %v124, 4294901760
    %661 = vmatmul.f32.gmra.mxu0 %v660
    %v662 = vpop.f32.mrf.mxu0
    %v663 = vadd.f32 %v598, %v662
    %v664 = vand.u32 %v125, 4294901760
    %665 = vmatmul.f32.gmra.mxu0 %v664
    %v666 = vpop.f32.mrf.mxu0
    %v667 = vadd.f32 %v602, %v666
    %v668 = vand.u32 %v126, 4294901760
    %669 = vmatmul.f32.gmra.mxu0 %v668
    %v670 = vpop.f32.mrf.mxu0
    %v671 = vadd.f32 %v606, %v670
    %v672 = vand.u32 %v127, 4294901760
    %673 = vmatmul.f32.gmra.mxu0 %v672
    %v674 = vpop.f32.mrf.mxu0
    %v675 = vadd.f32 %v610, %v674
    %v676 = vand.u32 %v128, 4294901760
    %677 = vmatmul.f32.gmra.mxu0 %v676
    %v678 = vpop.f32.mrf.mxu0
    %v679 = vadd.f32 %v614, %v678
    %v680 = vand.u32 %v129, 4294901760
    %681 = vmatmul.f32.gmra.mxu0 %v680
    %v682 = vpop.f32.mrf.mxu0
    %v683 = vadd.f32 %v618, %v682
    %v684 = vand.u32 %v130, 4294901760
    %685 = vmatmul.f32.gmra.mxu0 %v684
    %v686 = vpop.f32.mrf.mxu0
    %v687 = vadd.f32 %v622, %v686
    %688 = vdwg.mxu0
    %v689 = vand.u32 %v122, 4294901760
    %690 = vmatpush.msra.mxu0 %v689
    %v691 = vand.u32 %v118, 4294901760
    %692 = vmatpush.msra.mxu0 %v691
    %v693 = vand.u32 %v114, 4294901760
    %694 = vmatpush.msra.mxu0 %v693
    %v695 = vand.u32 %v110, 4294901760
    %696 = vmatpush.msra.mxu0 %v695
    %v697 = vand.u32 %v106, 4294901760
    %698 = vmatpush.msra.mxu0 %v697
    %v699 = vand.u32 %v102, 4294901760
    %700 = vmatpush.msra.mxu0 %v699
    %v701 = vand.u32 %v98, 4294901760
    %702 = vmatpush.msra.mxu0 %v701
    %v703 = vand.u32 %v94, 4294901760
    %704 = vmatpush.msra.mxu0 %v703
    %v705 = vand.u32 %v86, 4294901760
    %706 = vmatpush.msra.mxu0 %v705
    %v707 = vand.u32 %v82, 4294901760
    %708 = vmatpush.msra.mxu0 %v707
    %v709 = vand.u32 %v78, 4294901760
    %710 = vmatpush.msra.mxu0 %v709
    %v711 = vand.u32 %v74, 4294901760
    %712 = vmatpush.msra.mxu0 %v711
    %v713 = vand.u32 %v70, 4294901760
    %714 = vmatpush.msra.mxu0 %v713
    %v715 = vand.u32 %v66, 4294901760
    %716 = vmatpush.msra.mxu0 %v715
    %v717 = vand.u32 %v62, 4294901760
    %718 = vmatpush.msra.mxu0 %v717
    %v719 = vand.u32 %v58, 4294901760
    %720 = vmatpush.msra.mxu0 %v719
    %v721 = vand.u32 %v123, 4294901760
    %v722 = vsub.f32 %v123, %v721
    %v723 = vand.u32 %v722, 4294901760
    %v724 = vsub.f32 %v722, %v723
    %v725 = vand.u32 %v724, 4294901760
    %726 = vmatmul.f32.gmra.mxu0 %v725
    %v727 = vpop.f32.mrf.mxu0
    %v728 = vadd.f32 0.0, %v727
    %v729 = vand.u32 %v124, 4294901760
    %v730 = vsub.f32 %v124, %v729
    %v731 = vand.u32 %v730, 4294901760
    %v732 = vsub.f32 %v730, %v731
    %v733 = vand.u32 %v732, 4294901760
    %734 = vmatmul.f32.gmra.mxu0 %v733
    %v735 = vpop.f32.mrf.mxu0
    %v736 = vadd.f32 0.0, %v735
    %v737 = vand.u32 %v125, 4294901760
    %v738 = vsub.f32 %v125, %v737
    %v739 = vand.u32 %v738, 4294901760
    %v740 = vsub.f32 %v738, %v739
    %v741 = vand.u32 %v740, 4294901760
    %742 = vmatmul.f32.gmra.mxu0 %v741
    %v743 = vpop.f32.mrf.mxu0
    %v744 = vadd.f32 0.0, %v743
    %v745 = vand.u32 %v126, 4294901760
    %v746 = vsub.f32 %v126, %v745
    %v747 = vand.u32 %v746, 4294901760
    %v748 = vsub.f32 %v746, %v747
    %v749 = vand.u32 %v748, 4294901760
    %750 = vmatmul.f32.gmra.mxu0 %v749
    %v751 = vpop.f32.mrf.mxu0
    %v752 = vadd.f32 0.0, %v751
    %v753 = vand.u32 %v127, 4294901760
    %v754 = vsub.f32 %v127, %v753
    %v755 = vand.u32 %v754, 4294901760
    %v756 = vsub.f32 %v754, %v755
    %v757 = vand.u32 %v756, 4294901760
    %758 = vmatmul.f32.gmra.mxu0 %v757
    %v759 = vpop.f32.mrf.mxu0
    %v760 = vadd.f32 0.0, %v759
    %v761 = vand.u32 %v128, 4294901760
    %v762 = vsub.f32 %v128, %v761
    %v763 = vand.u32 %v762, 4294901760
    %v764 = vsub.f32 %v762, %v763
    %v765 = vand.u32 %v764, 4294901760
    %766 = vmatmul.f32.gmra.mxu0 %v765
    %v767 = vpop.f32.mrf.mxu0
    %v768 = vadd.f32 0.0, %v767
    %v769 = vand.u32 %v129, 4294901760
    %v770 = vsub.f32 %v129, %v769
    %v771 = vand.u32 %v770, 4294901760
    %v772 = vsub.f32 %v770, %v771
    %v773 = vand.u32 %v772, 4294901760
    %774 = vmatmul.f32.gmra.mxu0 %v773
    %v775 = vpop.f32.mrf.mxu0
    %v776 = vadd.f32 0.0, %v775
    %v777 = vand.u32 %v130, 4294901760
    %v778 = vsub.f32 %v130, %v777
    %v779 = vand.u32 %v778, 4294901760
    %v780 = vsub.f32 %v778, %v779
    %v781 = vand.u32 %v780, 4294901760
    %782 = vmatmul.f32.gmra.mxu0 %v781
    %v783 = vpop.f32.mrf.mxu0
    %v784 = vadd.f32 0.0, %v783
    %785 = vdwg.mxu0
    %v786 = vand.u32 %v122, 4294901760
    %v787 = vsub.f32 %v122, %v786
    %v788 = vand.u32 %v787, 4294901760
    %v789 = vsub.f32 %v787, %v788
    %v790 = vand.u32 %v789, 4294901760
    %791 = vmatpush.msra.mxu0 %v790
    %v792 = vand.u32 %v118, 4294901760
    %v793 = vsub.f32 %v118, %v792
    %v794 = vand.u32 %v793, 4294901760
    %v795 = vsub.f32 %v793, %v794
    %v796 = vand.u32 %v795, 4294901760
    %797 = vmatpush.msra.mxu0 %v796
    %v798 = vand.u32 %v114, 4294901760
    %v799 = vsub.f32 %v114, %v798
    %v800 = vand.u32 %v799, 4294901760
    %v801 = vsub.f32 %v799, %v800
    %v802 = vand.u32 %v801, 4294901760
    %803 = vmatpush.msra.mxu0 %v802
    %v804 = vand.u32 %v110, 4294901760
    %v805 = vsub.f32 %v110, %v804
    %v806 = vand.u32 %v805, 4294901760
    %v807 = vsub.f32 %v805, %v806
    %v808 = vand.u32 %v807, 4294901760
    %809 = vmatpush.msra.mxu0 %v808
    %v810 = vand.u32 %v106, 4294901760
    %v811 = vsub.f32 %v106, %v810
    %v812 = vand.u32 %v811, 4294901760
    %v813 = vsub.f32 %v811, %v812
    %v814 = vand.u32 %v813, 4294901760
    %815 = vmatpush.msra.mxu0 %v814
    %v816 = vand.u32 %v102, 4294901760
    %v817 = vsub.f32 %v102, %v816
    %v818 = vand.u32 %v817, 4294901760
    %v819 = vsub.f32 %v817, %v818
    %v820 = vand.u32 %v819, 4294901760
    %821 = vmatpush.msra.mxu0 %v820
    %v822 = vand.u32 %v98, 4294901760
    %v823 = vsub.f32 %v98, %v822
    %v824 = vand.u32 %v823, 4294901760
    %v825 = vsub.f32 %v823, %v824
    %v826 = vand.u32 %v825, 4294901760
    %827 = vmatpush.msra.mxu0 %v826
    %v828 = vand.u32 %v94, 4294901760
    %v829 = vsub.f32 %v94, %v828
    %v830 = vand.u32 %v829, 4294901760
    %v831 = vsub.f32 %v829, %v830
    %v832 = vand.u32 %v831, 4294901760
    %833 = vmatpush.msra.mxu0 %v832
    %v834 = vand.u32 %v86, 4294901760
    %v835 = vsub.f32 %v86, %v834
    %v836 = vand.u32 %v835, 4294901760
    %v837 = vsub.f32 %v835, %v836
    %v838 = vand.u32 %v837, 4294901760
    %839 = vmatpush.msra.mxu0 %v838
    %v840 = vand.u32 %v82, 4294901760
    %v841 = vsub.f32 %v82, %v840
    %v842 = vand.u32 %v841, 4294901760
    %v843 = vsub.f32 %v841, %v842
    %v844 = vand.u32 %v843, 4294901760
    %845 = vmatpush.msra.mxu0 %v844
    %v846 = vand.u32 %v78, 4294901760
    %v847 = vsub.f32 %v78, %v846
    %v848 = vand.u32 %v847, 4294901760
    %v849 = vsub.f32 %v847, %v848
    %v850 = vand.u32 %v849, 4294901760
    %851 = vmatpush.msra.mxu0 %v850
    %v852 = vand.u32 %v74, 4294901760
    %v853 = vsub.f32 %v74, %v852
    %v854 = vand.u32 %v853, 4294901760
    %v855 = vsub.f32 %v853, %v854
    %v856 = vand.u32 %v855, 4294901760
    %857 = vmatpush.msra.mxu0 %v856
    %v858 = vand.u32 %v70, 4294901760
    %v859 = vsub.f32 %v70, %v858
    %v860 = vand.u32 %v859, 4294901760
    %v861 = vsub.f32 %v859, %v860
    %v862 = vand.u32 %v861, 4294901760
    %863 = vmatpush.msra.mxu0 %v862
    %v864 = vand.u32 %v66, 4294901760
    %v865 = vsub.f32 %v66, %v864
    %v866 = vand.u32 %v865, 4294901760
    %v867 = vsub.f32 %v865, %v866
    %v868 = vand.u32 %v867, 4294901760
    %869 = vmatpush.msra.mxu0 %v868
    %v870 = vand.u32 %v62, 4294901760
    %v871 = vsub.f32 %v62, %v870
    %v872 = vand.u32 %v871, 4294901760
    %v873 = vsub.f32 %v871, %v872
    %v874 = vand.u32 %v873, 4294901760
    %875 = vmatpush.msra.mxu0 %v874
    %v876 = vand.u32 %v58, 4294901760
    %v877 = vsub.f32 %v58, %v876
    %v878 = vand.u32 %v877, 4294901760
    %v879 = vsub.f32 %v877, %v878
    %v880 = vand.u32 %v879, 4294901760
    %881 = vmatpush.msra.mxu0 %v880
    %v882 = vand.u32 %v123, 4294901760
    %883 = vmatmul.f32.gmra.mxu0 %v882
    %v884 = vpop.f32.mrf.mxu0
    %v885 = vadd.f32 %v728, %v884
    %v886 = vand.u32 %v124, 4294901760
    %887 = vmatmul.f32.gmra.mxu0 %v886
    %v888 = vpop.f32.mrf.mxu0
    %v889 = vadd.f32 %v736, %v888
    %v890 = vand.u32 %v125, 4294901760
    %891 = vmatmul.f32.gmra.mxu0 %v890
    %v892 = vpop.f32.mrf.mxu0
    %v893 = vadd.f32 %v744, %v892
    %v894 = vand.u32 %v126, 4294901760
    %895 = vmatmul.f32.gmra.mxu0 %v894
    %v896 = vpop.f32.mrf.mxu0
    %v897 = vadd.f32 %v752, %v896
    %v898 = vand.u32 %v127, 4294901760
    %899 = vmatmul.f32.gmra.mxu0 %v898
    %v900 = vpop.f32.mrf.mxu0
    %v901 = vadd.f32 %v760, %v900
    %v902 = vand.u32 %v128, 4294901760
    %903 = vmatmul.f32.gmra.mxu0 %v902
    %v904 = vpop.f32.mrf.mxu0
    %v905 = vadd.f32 %v768, %v904
    %v906 = vand.u32 %v129, 4294901760
    %907 = vmatmul.f32.gmra.mxu0 %v906
    %v908 = vpop.f32.mrf.mxu0
    %v909 = vadd.f32 %v776, %v908
    %v910 = vand.u32 %v130, 4294901760
    %911 = vmatmul.f32.gmra.mxu0 %v910
    %v912 = vpop.f32.mrf.mxu0
    %v913 = vadd.f32 %v784, %v912
    %914 = vdwg.mxu0
    %v915 = vand.u32 %v122, 4294901760
    %v916 = vsub.f32 %v122, %v915
    %917 = vmatpush.msra.mxu0 %v916
    %v918 = vand.u32 %v118, 4294901760
    %v919 = vsub.f32 %v118, %v918
    %920 = vmatpush.msra.mxu0 %v919
    %v921 = vand.u32 %v114, 4294901760
    %v922 = vsub.f32 %v114, %v921
    %923 = vmatpush.msra.mxu0 %v922
    %v924 = vand.u32 %v110, 4294901760
    %v925 = vsub.f32 %v110, %v924
    %926 = vmatpush.msra.mxu0 %v925
    %v927 = vand.u32 %v106, 4294901760
    %v928 = vsub.f32 %v106, %v927
    %929 = vmatpush.msra.mxu0 %v928
    %v930 = vand.u32 %v102, 4294901760
    %v931 = vsub.f32 %v102, %v930
    %932 = vmatpush.msra.mxu0 %v931
    %v933 = vand.u32 %v98, 4294901760
    %v934 = vsub.f32 %v98, %v933
    %935 = vmatpush.msra.mxu0 %v934
    %v936 = vand.u32 %v94, 4294901760
    %v937 = vsub.f32 %v94, %v936
    %938 = vmatpush.msra.mxu0 %v937
    %v939 = vand.u32 %v86, 4294901760
    %v940 = vsub.f32 %v86, %v939
    %941 = vmatpush.msra.mxu0 %v940
    %v942 = vand.u32 %v82, 4294901760
    %v943 = vsub.f32 %v82, %v942
    %944 = vmatpush.msra.mxu0 %v943
    %v945 = vand.u32 %v78, 4294901760
    %v946 = vsub.f32 %v78, %v945
    %947 = vmatpush.msra.mxu0 %v946
    %v948 = vand.u32 %v74, 4294901760
    %v949 = vsub.f32 %v74, %v948
    %950 = vmatpush.msra.mxu0 %v949
    %v951 = vand.u32 %v70, 4294901760
    %v952 = vsub.f32 %v70, %v951
    %953 = vmatpush.msra.mxu0 %v952
    %v954 = vand.u32 %v66, 4294901760
    %v955 = vsub.f32 %v66, %v954
    %956 = vmatpush.msra.mxu0 %v955
    %v957 = vand.u32 %v62, 4294901760
    %v958 = vsub.f32 %v62, %v957
    %959 = vmatpush.msra.mxu0 %v958
    %v960 = vand.u32 %v58, 4294901760
    %v961 = vsub.f32 %v58, %v960
    %962 = vmatpush.msra.mxu0 %v961
    %v963 = vand.u32 %v123, 4294901760
    %v964 = vsub.f32 %v123, %v963
    %965 = vmatmul.f32.gmra.mxu0 %v964
    %v966 = vpop.f32.mrf.mxu0
    %v967 = vadd.f32 %v885, %v966
    %v968 = vand.u32 %v124, 4294901760
    %v969 = vsub.f32 %v124, %v968
    %970 = vmatmul.f32.gmra.mxu0 %v969
    %v971 = vpop.f32.mrf.mxu0
    %v972 = vadd.f32 %v889, %v971
    %v973 = vand.u32 %v125, 4294901760
    %v974 = vsub.f32 %v125, %v973
    %975 = vmatmul.f32.gmra.mxu0 %v974
    %v976 = vpop.f32.mrf.mxu0
    %v977 = vadd.f32 %v893, %v976
    %v978 = vand.u32 %v126, 4294901760
    %v979 = vsub.f32 %v126, %v978
    %980 = vmatmul.f32.gmra.mxu0 %v979
    %v981 = vpop.f32.mrf.mxu0
    %v982 = vadd.f32 %v897, %v981
    %v983 = vand.u32 %v127, 4294901760
    %v984 = vsub.f32 %v127, %v983
    %985 = vmatmul.f32.gmra.mxu0 %v984
    %v986 = vpop.f32.mrf.mxu0
    %v987 = vadd.f32 %v901, %v986
    %v988 = vand.u32 %v128, 4294901760
    %v989 = vsub.f32 %v128, %v988
    %990 = vmatmul.f32.gmra.mxu0 %v989
    %v991 = vpop.f32.mrf.mxu0
    %v992 = vadd.f32 %v905, %v991
    %v993 = vand.u32 %v129, 4294901760
    %v994 = vsub.f32 %v129, %v993
    %995 = vmatmul.f32.gmra.mxu0 %v994
    %v996 = vpop.f32.mrf.mxu0
    %v997 = vadd.f32 %v909, %v996
    %v998 = vand.u32 %v130, 4294901760
    %v999 = vsub.f32 %v130, %v998
    %1000 = vmatmul.f32.gmra.mxu0 %v999
    %v1001 = vpop.f32.mrf.mxu0
    %v1002 = vadd.f32 %v913, %v1001
    %1003 = vdwg.mxu0
    %v1004 = vand.u32 %v122, 4294901760
    %1005 = vmatpush.msra.mxu0 %v1004
    %v1006 = vand.u32 %v118, 4294901760
    %1007 = vmatpush.msra.mxu0 %v1006
    %v1008 = vand.u32 %v114, 4294901760
    %1009 = vmatpush.msra.mxu0 %v1008
    %v1010 = vand.u32 %v110, 4294901760
    %1011 = vmatpush.msra.mxu0 %v1010
    %v1012 = vand.u32 %v106, 4294901760
    %1013 = vmatpush.msra.mxu0 %v1012
    %v1014 = vand.u32 %v102, 4294901760
    %1015 = vmatpush.msra.mxu0 %v1014
    %v1016 = vand.u32 %v98, 4294901760
    %1017 = vmatpush.msra.mxu0 %v1016
    %v1018 = vand.u32 %v94, 4294901760
    %1019 = vmatpush.msra.mxu0 %v1018
    %v1020 = vand.u32 %v86, 4294901760
    %1021 = vmatpush.msra.mxu0 %v1020
    %v1022 = vand.u32 %v82, 4294901760
    %1023 = vmatpush.msra.mxu0 %v1022
    %v1024 = vand.u32 %v78, 4294901760
    %1025 = vmatpush.msra.mxu0 %v1024
    %v1026 = vand.u32 %v74, 4294901760
    %1027 = vmatpush.msra.mxu0 %v1026
    %v1028 = vand.u32 %v70, 4294901760
    %1029 = vmatpush.msra.mxu0 %v1028
    %v1030 = vand.u32 %v66, 4294901760
    %1031 = vmatpush.msra.mxu0 %v1030
    %v1032 = vand.u32 %v62, 4294901760
    %1033 = vmatpush.msra.mxu0 %v1032
    %v1034 = vand.u32 %v58, 4294901760
    %1035 = vmatpush.msra.mxu0 %v1034
    %v1036 = vand.u32 %v123, 4294901760
    %v1037 = vsub.f32 %v123, %v1036
    %v1038 = vand.u32 %v1037, 4294901760
    %1039 = vmatmul.f32.gmra.mxu0 %v1038
    %v1040 = vpop.f32.mrf.mxu0
    %v1041 = vadd.f32 %v967, %v1040
    %v1042 = vand.u32 %v124, 4294901760
    %v1043 = vsub.f32 %v124, %v1042
    %v1044 = vand.u32 %v1043, 4294901760
    %1045 = vmatmul.f32.gmra.mxu0 %v1044
    %v1046 = vpop.f32.mrf.mxu0
    %v1047 = vadd.f32 %v972, %v1046
    %v1048 = vand.u32 %v125, 4294901760
    %v1049 = vsub.f32 %v125, %v1048
    %v1050 = vand.u32 %v1049, 4294901760
    %1051 = vmatmul.f32.gmra.mxu0 %v1050
    %v1052 = vpop.f32.mrf.mxu0
    %v1053 = vadd.f32 %v977, %v1052
    %v1054 = vand.u32 %v126, 4294901760
    %v1055 = vsub.f32 %v126, %v1054
    %v1056 = vand.u32 %v1055, 4294901760
    %1057 = vmatmul.f32.gmra.mxu0 %v1056
    %v1058 = vpop.f32.mrf.mxu0
    %v1059 = vadd.f32 %v982, %v1058
    %v1060 = vand.u32 %v127, 4294901760
    %v1061 = vsub.f32 %v127, %v1060
    %v1062 = vand.u32 %v1061, 4294901760
    %1063 = vmatmul.f32.gmra.mxu0 %v1062
    %v1064 = vpop.f32.mrf.mxu0
    %v1065 = vadd.f32 %v987, %v1064
    %v1066 = vand.u32 %v128, 4294901760
    %v1067 = vsub.f32 %v128, %v1066
    %v1068 = vand.u32 %v1067, 4294901760
    %1069 = vmatmul.f32.gmra.mxu0 %v1068
    %v1070 = vpop.f32.mrf.mxu0
    %v1071 = vadd.f32 %v992, %v1070
    %v1072 = vand.u32 %v129, 4294901760
    %v1073 = vsub.f32 %v129, %v1072
    %v1074 = vand.u32 %v1073, 4294901760
    %1075 = vmatmul.f32.gmra.mxu0 %v1074
    %v1076 = vpop.f32.mrf.mxu0
    %v1077 = vadd.f32 %v997, %v1076
    %v1078 = vand.u32 %v130, 4294901760
    %v1079 = vsub.f32 %v130, %v1078
    %v1080 = vand.u32 %v1079, 4294901760
    %1081 = vmatmul.f32.gmra.mxu0 %v1080
    %v1082 = vpop.f32.mrf.mxu0
    %v1083 = vadd.f32 %v1002, %v1082
    %1084 = vdwg.mxu0
    %v1085 = vand.u32 %v122, 4294901760
    %v1086 = vsub.f32 %v122, %v1085
    %v1087 = vand.u32 %v1086, 4294901760
    %1088 = vmatpush.msra.mxu0 %v1087
    %v1089 = vand.u32 %v118, 4294901760
    %v1090 = vsub.f32 %v118, %v1089
    %v1091 = vand.u32 %v1090, 4294901760
    %1092 = vmatpush.msra.mxu0 %v1091
    %v1093 = vand.u32 %v114, 4294901760
    %v1094 = vsub.f32 %v114, %v1093
    %v1095 = vand.u32 %v1094, 4294901760
    %1096 = vmatpush.msra.mxu0 %v1095
    %v1097 = vand.u32 %v110, 4294901760
    %v1098 = vsub.f32 %v110, %v1097
    %v1099 = vand.u32 %v1098, 4294901760
    %1100 = vmatpush.msra.mxu0 %v1099
    %v1101 = vand.u32 %v106, 4294901760
    %v1102 = vsub.f32 %v106, %v1101
    %v1103 = vand.u32 %v1102, 4294901760
    %1104 = vmatpush.msra.mxu0 %v1103
    %v1105 = vand.u32 %v102, 4294901760
    %v1106 = vsub.f32 %v102, %v1105
    %v1107 = vand.u32 %v1106, 4294901760
    %1108 = vmatpush.msra.mxu0 %v1107
    %v1109 = vand.u32 %v98, 4294901760
    %v1110 = vsub.f32 %v98, %v1109
    %v1111 = vand.u32 %v1110, 4294901760
    %1112 = vmatpush.msra.mxu0 %v1111
    %v1113 = vand.u32 %v94, 4294901760
    %v1114 = vsub.f32 %v94, %v1113
    %v1115 = vand.u32 %v1114, 4294901760
    %1116 = vmatpush.msra.mxu0 %v1115
    %v1117 = vand.u32 %v86, 4294901760
    %v1118 = vsub.f32 %v86, %v1117
    %v1119 = vand.u32 %v1118, 4294901760
    %1120 = vmatpush.msra.mxu0 %v1119
    %v1121 = vand.u32 %v82, 4294901760
    %v1122 = vsub.f32 %v82, %v1121
    %v1123 = vand.u32 %v1122, 4294901760
    %1124 = vmatpush.msra.mxu0 %v1123
    %v1125 = vand.u32 %v78, 4294901760
    %v1126 = vsub.f32 %v78, %v1125
    %v1127 = vand.u32 %v1126, 4294901760
    %1128 = vmatpush.msra.mxu0 %v1127
    %v1129 = vand.u32 %v74, 4294901760
    %v1130 = vsub.f32 %v74, %v1129
    %v1131 = vand.u32 %v1130, 4294901760
    %1132 = vmatpush.msra.mxu0 %v1131
    %v1133 = vand.u32 %v70, 4294901760
    %v1134 = vsub.f32 %v70, %v1133
    %v1135 = vand.u32 %v1134, 4294901760
    %1136 = vmatpush.msra.mxu0 %v1135
    %v1137 = vand.u32 %v66, 4294901760
    %v1138 = vsub.f32 %v66, %v1137
    %v1139 = vand.u32 %v1138, 4294901760
    %1140 = vmatpush.msra.mxu0 %v1139
    %v1141 = vand.u32 %v62, 4294901760
    %v1142 = vsub.f32 %v62, %v1141
    %v1143 = vand.u32 %v1142, 4294901760
    %1144 = vmatpush.msra.mxu0 %v1143
    %v1145 = vand.u32 %v58, 4294901760
    %v1146 = vsub.f32 %v58, %v1145
    %v1147 = vand.u32 %v1146, 4294901760
    %1148 = vmatpush.msra.mxu0 %v1147
    %v1149 = vand.u32 %v123, 4294901760
    %1150 = vmatmul.f32.gmra.mxu0 %v1149
    %v1151 = vpop.f32.mrf.mxu0
    %v1152 = vadd.f32 %v1041, %v1151
    %v1153 = vand.u32 %v124, 4294901760
    %1154 = vmatmul.f32.gmra.mxu0 %v1153
    %v1155 = vpop.f32.mrf.mxu0
    %v1156 = vadd.f32 %v1047, %v1155
    %v1157 = vand.u32 %v125, 4294901760
    %1158 = vmatmul.f32.gmra.mxu0 %v1157
    %v1159 = vpop.f32.mrf.mxu0
    %v1160 = vadd.f32 %v1053, %v1159
    %v1161 = vand.u32 %v126, 4294901760
    %1162 = vmatmul.f32.gmra.mxu0 %v1161
    %v1163 = vpop.f32.mrf.mxu0
    %v1164 = vadd.f32 %v1059, %v1163
    %v1165 = vand.u32 %v127, 4294901760
    %1166 = vmatmul.f32.gmra.mxu0 %v1165
    %v1167 = vpop.f32.mrf.mxu0
    %v1168 = vadd.f32 %v1065, %v1167
    %v1169 = vand.u32 %v128, 4294901760
    %1170 = vmatmul.f32.gmra.mxu0 %v1169
    %v1171 = vpop.f32.mrf.mxu0
    %v1172 = vadd.f32 %v1071, %v1171
    %v1173 = vand.u32 %v129, 4294901760
    %1174 = vmatmul.f32.gmra.mxu0 %v1173
    %v1175 = vpop.f32.mrf.mxu0
    %v1176 = vadd.f32 %v1077, %v1175
    %v1177 = vand.u32 %v130, 4294901760
    %1178 = vmatmul.f32.gmra.mxu0 %v1177
    %v1179 = vpop.f32.mrf.mxu0
    %v1180 = vadd.f32 %v1083, %v1179
    %1181 = vdwg.mxu0
    %v1182 = vand.u32 %v122, 4294901760
    %1183 = vmatpush.msra.mxu0 %v1182
    %v1184 = vand.u32 %v118, 4294901760
    %1185 = vmatpush.msra.mxu0 %v1184
    %v1186 = vand.u32 %v114, 4294901760
    %1187 = vmatpush.msra.mxu0 %v1186
    %v1188 = vand.u32 %v110, 4294901760
    %1189 = vmatpush.msra.mxu0 %v1188
    %v1190 = vand.u32 %v106, 4294901760
    %1191 = vmatpush.msra.mxu0 %v1190
    %v1192 = vand.u32 %v102, 4294901760
    %1193 = vmatpush.msra.mxu0 %v1192
    %v1194 = vand.u32 %v98, 4294901760
    %1195 = vmatpush.msra.mxu0 %v1194
    %v1196 = vand.u32 %v94, 4294901760
    %1197 = vmatpush.msra.mxu0 %v1196
    %v1198 = vand.u32 %v86, 4294901760
    %1199 = vmatpush.msra.mxu0 %v1198
    %v1200 = vand.u32 %v82, 4294901760
    %1201 = vmatpush.msra.mxu0 %v1200
    %v1202 = vand.u32 %v78, 4294901760
    %1203 = vmatpush.msra.mxu0 %v1202
    %v1204 = vand.u32 %v74, 4294901760
    %1205 = vmatpush.msra.mxu0 %v1204
    %v1206 = vand.u32 %v70, 4294901760
    %1207 = vmatpush.msra.mxu0 %v1206
    %v1208 = vand.u32 %v66, 4294901760
    %1209 = vmatpush.msra.mxu0 %v1208
    %v1210 = vand.u32 %v62, 4294901760
    %1211 = vmatpush.msra.mxu0 %v1210
    %v1212 = vand.u32 %v58, 4294901760
    %1213 = vmatpush.msra.mxu0 %v1212
    %v1214 = vand.u32 %v123, 4294901760
    %1215 = vmatmul.f32.gmra.mxu0 %v1214
    %v1216 = vpop.f32.mrf.mxu0
    %v1217 = vadd.f32 %v1152, %v1216
    %v1218 = vand.u32 %v124, 4294901760
    %1219 = vmatmul.f32.gmra.mxu0 %v1218
    %v1220 = vpop.f32.mrf.mxu0
    %v1221 = vadd.f32 %v1156, %v1220
    %v1222 = vand.u32 %v125, 4294901760
    %1223 = vmatmul.f32.gmra.mxu0 %v1222
    %v1224 = vpop.f32.mrf.mxu0
    %v1225 = vadd.f32 %v1160, %v1224
    %v1226 = vand.u32 %v126, 4294901760
    %1227 = vmatmul.f32.gmra.mxu0 %v1226
    %v1228 = vpop.f32.mrf.mxu0
    %v1229 = vadd.f32 %v1164, %v1228
    %v1230 = vand.u32 %v127, 4294901760
    %1231 = vmatmul.f32.gmra.mxu0 %v1230
    %v1232 = vpop.f32.mrf.mxu0
    %v1233 = vadd.f32 %v1168, %v1232
    %v1234 = vand.u32 %v128, 4294901760
    %1235 = vmatmul.f32.gmra.mxu0 %v1234
    %v1236 = vpop.f32.mrf.mxu0
    %v1237 = vadd.f32 %v1172, %v1236
    %v1238 = vand.u32 %v129, 4294901760
    %1239 = vmatmul.f32.gmra.mxu0 %v1238
    %v1240 = vpop.f32.mrf.mxu0
    %v1241 = vadd.f32 %v1176, %v1240
    %v1242 = vand.u32 %v130, 4294901760
    %1243 = vmatmul.f32.gmra.mxu0 %v1242
    %v1244 = vpop.f32.mrf.mxu0
    %v1245 = vadd.f32 %v1180, %v1244
    %1246 = vdwg.mxu0
    %v1247 = vmul.f32 %v659, %v12
    %v1248 = vmul.f32 %v1217, %v13
    %v1249 = vmul.f32 %v663, %v14
    %v1250 = vmul.f32 %v1221, %v15
    %v1251 = vmul.f32 %v667, %v16
    %v1252 = vmul.f32 %v1225, %v17
    %v1253 = vmul.f32 %v671, %v18
    %v1254 = vmul.f32 %v1229, %v19
    %v1255 = vadd.f32 %v1247, %v1249
    %v1256 = vadd.f32 %v1255, %v1251
    %v1257 = vadd.f32 %v1256, %v1253
    %v1258 = vrot.slane %v1257, 4
    %v1259 = vadd.f32 %v1257, %v1258
    %v1260 = vrot.slane %v1259, 2
    %v1261 = vadd.f32 %v1259, %v1260
    %v1262 = vrot.slane %v1261, 1
    %v1263 = vadd.f32 %v1261, %v1262
    %v1264 = vadd.f32 %v1248, %v1250
    %v1265 = vadd.f32 %v1264, %v1252
    %v1266 = vadd.f32 %v1265, %v1254
    %v1267 = vrot.slane %v1266, 4
    %v1268 = vadd.f32 %v1266, %v1267
    %v1269 = vrot.slane %v1268, 2
    %v1270 = vadd.f32 %v1268, %v1269
    %v1271 = vrot.slane %v1270, 1
    %v1272 = vadd.f32 %v1270, %v1271
    %v1273 = vadd.f32 %v1263, %v20
    %v1274 = vadd.f32 %v1272, %v21
    %1277 = vst [vmem:[#allocation1] sm:$0xff] %v1273
    %1278 = vst [vmem:[#allocation1 + $0x9] sm:$0xff] %v1274
    %s1279 = scalar_lea.vmem [#allocation1], 4
    %v1280 = vld [vmem:[%s1279] ss:$9 sm:$0xff]
    %v1282 = vlaneseq
    %vm1283 = vcmp.ge.s32.totalorder %v1282, 0
    %vm1284 = vcmp.lt.s32.totalorder %v1282, 256
    %vm1285 = vmand %vm1283, %vm1284
    %1286 = vst.msk [vmem:[#allocation2] ss:$2 sm:$0x3] %vm1285, %v1280
    %v1287 = vmul.f32 %v675, %v12
    %v1288 = vmul.f32 %v1233, %v13
    %v1289 = vmul.f32 %v679, %v14
    %v1290 = vmul.f32 %v1237, %v15
    %v1291 = vmul.f32 %v683, %v16
    %v1292 = vmul.f32 %v1241, %v17
    %v1293 = vmul.f32 %v687, %v18
    %v1294 = vmul.f32 %v1245, %v19
    %v1295 = vadd.f32 %v1287, %v1289
    %v1296 = vadd.f32 %v1295, %v1291
    %v1297 = vadd.f32 %v1296, %v1293
    %v1298 = vrot.slane %v1297, 4
    %v1299 = vadd.f32 %v1297, %v1298
    %v1300 = vrot.slane %v1299, 2
    %v1301 = vadd.f32 %v1299, %v1300
    %v1302 = vrot.slane %v1301, 1
    %v1303 = vadd.f32 %v1301, %v1302
    %v1304 = vadd.f32 %v1288, %v1290
    %v1305 = vadd.f32 %v1304, %v1292
    %v1306 = vadd.f32 %v1305, %v1294
    %v1307 = vrot.slane %v1306, 4
    %v1308 = vadd.f32 %v1306, %v1307
    %v1309 = vrot.slane %v1308, 2
    %v1310 = vadd.f32 %v1308, %v1309
    %v1311 = vrot.slane %v1310, 1
    %v1312 = vadd.f32 %v1310, %v1311
    %v1313 = vadd.f32 %v1303, %v20
    %v1314 = vadd.f32 %v1312, %v21
    %1317 = vst [vmem:[#allocation1] sm:$0xff] %v1313
    %1318 = vst [vmem:[#allocation1 + $0x9] sm:$0xff] %v1314
    %s1319 = scalar_lea.vmem [#allocation1], 5
    %v1320 = vld [vmem:[%s1319] ss:$9 sm:$0xff]
    %s1322 = scalar_lea.vmem [#allocation2], 1
    %1323 = vst.msk [vmem:[%s1322] ss:$2 sm:$0x3] %vm1285, %v1320
    // Predicated region
    $region10: #{forward.1} parent=1 // pred_check
      _
    $region11: #{forward.1} parent=1 // pred_check_branch
      %1325 = sbr.rel (0) target = $region13
    $region12: #{forward.1} parent=1 // pred_region
      %1327 = vsyncadd [#allocation3], 0
      %s1329 = sshll.u32 [#allocation2], 4
      %s1330 = int_to_ptr.vmem [resolvable:$true] %s1329
      %s1331 = sshll.u32 %s2, 4
      %s1332 = int_to_ptr.hbm [resolvable:$true] %s1331
      %1334 = dma.vmem_to_hbm [thread:$0]  %s1330, 64, %s1332, [#allocation3]
    $region13: #{forward.1} parent=1 // pred_fallthru
      _
    // Predicated region
    $region14: #{forward.1} parent=1 // pred_check
      _
    $region15: #{forward.1} parent=1 // pred_check_branch
      %1336 = sbr.rel (0) target = $region17
    $region16: #{forward.1} parent=1 // pred_region
      %1338 = dma.done [#allocation3], 64
    $region17: #{forward.1} parent=1 // pred_fallthru
      _
    %1339 = vsyncpa [#allocation3], 1

</llo_original>
